<compile_context>
chip_gen: v5e
topology: v5e:2x2
jax: 0.10.0
libtpu: 0.0.40
codegen_flags: <defaults>
</compile_context>

<pallas_src>
import numpy as np
import jax
import jax.numpy as jnp
from jax import lax
from jax.experimental import pallas as pl
from jax.experimental.pallas import tpu as pltpu


def _bilstm_kernel(gin_ref, len_ref, whbd_ref, val_ref, last_ref):
    """Fused bidirectional LSTM recurrence.

    gin_ref  : [T, B, 8H] f32  pre-projected gate inputs (x @ Wi + b_ih + b_hh),
                               gate-major fused columns [i_f i_b f_f f_b g_f g_b o_f o_b]
    len_ref  : [B, 1]    i32   packed-sequence lengths
    whbd_ref : [2H, 8H]  bf16  block-diagonal recurrent weights (same column layout)
    val_ref  : [B, T, 2H] f32  masked token encodings, lanes [fwd | bwd]
    last_ref : [B, 2H]   f32   [h_fwd(len-1) | h_bwd(0)]
    """
    T, B, G8 = gin_ref.shape
    H2 = G8 // 4                    # 2H  (fused state width)
    H = H2 // 2                     # per-direction hidden size

    wh = whbd_ref[...]                                        # [2H, 8H] bf16
    lens2 = jnp.broadcast_to(len_ref[...], (B, H2))           # [B, 2H] i32 (hoisted)

    lane8 = lax.broadcasted_iota(jnp.int32, (B, G8), 1)
    is_fwd8 = (lane8 % H2) < H                                # fwd gate columns
    lane2 = lax.broadcasted_iota(jnp.int32, (B, H2), 1)
    is_fwd2 = lane2 < H                                       # fwd state lanes

    h = jnp.zeros((B, H2), jnp.float32)                       # [h_f | h_b]
    c = jnp.zeros((B, H2), jnp.float32)

    # Full unroll: T is small & static.  Each step runs the forward direction on
    # t = k and the backward direction on t = T-1-k as one fused 128-lane cell.
    for k in range(T):
        a_f = gin_ref[k]                                      # gate inputs @ t = k
        a_b = gin_ref[T - 1 - k]                              # gate inputs @ t = T-1-k
        gin = jnp.where(is_fwd8, a_f, a_b)                    # [B, 8H]

        gh = jnp.dot(h.astype(jnp.bfloat16), wh,
                     preferred_element_type=jnp.float32)      # [B, 8H] (MXU, bf16 in / f32 acc)
        g = gin + gh
        i = jax.nn.sigmoid(g[:, 0 * H2:1 * H2])
        f = jax.nn.sigmoid(g[:, 1 * H2:2 * H2])
        gg = jnp.tanh(g[:, 2 * H2:3 * H2])
        o = jax.nn.sigmoid(g[:, 3 * H2:4 * H2])
        c_new = f * c + i * gg
        h_new = o * jnp.tanh(c_new)

        # Packed-sequence semantics: freeze state once t >= len (per direction);
        # masks depend only on k/lens, so they sit off the recurrent chain.
        t_eff = jnp.where(is_fwd2, k, T - 1 - k)              # [B, 2H]
        valid = t_eff < lens2
        out = jnp.where(valid, h_new, 0.0)                    # zero at padded steps
        val_ref[:, k:k + 1, 0:H] = out[:, None, 0:H]          # fwd half @ t = k
        val_ref[:, T - 1 - k:T - k, H:H2] = out[:, None, H:H2]  # bwd half @ t = T-1-k
        h = jnp.where(valid, h_new, h)
        c = jnp.where(valid, c_new, c)

    last_ref[...] = h                                         # [h_f(len-1) | h_b(0)]


def sketch_encoder_forward(params, token_id, lengths, var_time_step_mask):
    """Mirrors SketchEncoder.forward: returns dict(value, mask, var_time_step_mask, last_state)."""
    B, T = token_id.shape
    H = params["w_hh_f"].shape[1]          # PyTorch layout [4H, H]
    H2 = 2 * H
    B_pad = max(8, -(-B // 8) * 8)         # pad batch to a sublane multiple

    def fuse_cols(a_f, a_b):
        # [X, 4H] x 2 -> [X, 8H]: gate-major, per-gate [fwd | bwd] H-blocks.
        X = a_f.shape[0]
        return jnp.stack([a_f.reshape(X, 4, H), a_b.reshape(X, 4, H)],
                         axis=2).reshape(X, 8 * H)

    f32 = lambda a: jnp.asarray(a, jnp.float32)
    wi_cat = fuse_cols(f32(params["w_ih_f"]).T, f32(params["w_ih_b"]).T)        # [E, 8H]
    b_cat = fuse_cols(f32(params["b_ih_f"] + params["b_hh_f"])[None, :],
                      f32(params["b_ih_b"] + params["b_hh_b"])[None, :])        # [1, 8H]
    zeros_h = jnp.zeros((H, 4 * H), jnp.float32)
    wh_bd = jnp.concatenate(
        [fuse_cols(f32(params["w_hh_f"]).T, zeros_h),                           # h_f rows -> fwd cols
         fuse_cols(zeros_h, f32(params["w_hh_b"]).T)],                          # h_b rows -> bwd cols
        axis=0).astype(jnp.bfloat16)                                            # [2H, 8H]

    # Hoisted input projection: fold Wi (both directions) and the summed biases
    # into the embedding table, so the kernel never touches x or Wi.
    table = jnp.dot(f32(params["embedding"]), wi_cat,
                    preferred_element_type=jnp.float32) + b_cat                 # [VOCAB, 8H]

    tok_p = jnp.pad(token_id.astype(jnp.int32), ((0, B_pad - B), (0, 0)))       # [B_pad, T]
    len_p = jnp.pad(lengths.astype(jnp.int32), (0, B_pad - B)).reshape(B_pad, 1)
    gin = jnp.take(table, tok_p.T, axis=0)                                      # [T, B_pad, 8H]

    vmem = pl.BlockSpec(memory_space=pltpu.MemorySpace.VMEM)
    val_p, last_p = pl.pallas_call(
        _bilstm_kernel,
        out_shape=(jax.ShapeDtypeStruct((B_pad, T, H2), jnp.float32),
                   jax.ShapeDtypeStruct((B_pad, H2), jnp.float32)),
        in_specs=[vmem, vmem, vmem],
        out_specs=(vmem, vmem),
    )(gin, len_p, wh_bd)

    token_mask = (jnp.arange(T)[None, :] < lengths[:, None]).astype(jnp.float32)
    return {
        "value": val_p[:B],            # already masked & [fwd|bwd]-concatenated in-kernel
        "mask": token_mask,
        "var_time_step_mask": var_time_step_mask,
        "last_state": last_p[:B],
    }


def init_params(key, vocab_size, embedding_size, output_size):
    H = output_size // 2
    E = embedding_size
    k = 1.0 / np.sqrt(H)
    keys = jax.random.split(key, 9)
    u = lambda kk, shape: jax.random.uniform(kk, shape, jnp.float32, -k, k)
    return {
        # nn.Embedding weight, init normal(0, 0.02) as in init_weights()
        "embedding": 0.02 * jax.random.normal(keys[0], (vocab_size, E), jnp.float32),
        # nn.LSTM weights (forward / reverse direction), PyTorch default uniform(-1/sqrt(H), 1/sqrt(H))
        "w_ih_f": u(keys[1], (4 * H, E)),
        "w_hh_f": u(keys[2], (4 * H, H)),
        "b_ih_f": u(keys[3], (4 * H,)),
        "b_hh_f": u(keys[4], (4 * H,)),
        "w_ih_b": u(keys[5], (4 * H, E)),
        "w_hh_b": u(keys[6], (4 * H, H)),
        "b_ih_b": u(keys[7], (4 * H,)),
        "b_hh_b": u(keys[8], (4 * H,)),
    }


def _ref_forward(params, token_id, lengths):
    """Pure numpy reference of the packed bidirectional LSTM (for verification)."""
    emb = np.asarray(params["embedding"])[np.asarray(token_id)]
    B, T, _ = emb.shape
    H = params["w_hh_f"].shape[1]
    sigmoid = lambda x: 1.0 / (1.0 + np.exp(-x))

    def run_dir(wi, wh, bi, bh, reverse):
        wi, wh, bi, bh = (np.asarray(a, np.float32) for a in (wi, wh, bi, bh))
        out = np.zeros((B, T, H), np.float32)
        last = np.zeros((B, H), np.float32)
        for b in range(B):
            L = int(lengths[b])
            h = np.zeros(H, np.float32)
            c = np.zeros(H, np.float32)
            ts = range(L - 1, -1, -1) if reverse else range(L)
            for t in ts:
                g = wi @ emb[b, t] + wh @ h + bi + bh
                i, f = sigmoid(g[0:H]), sigmoid(g[H:2 * H])
                gg, o = np.tanh(g[2 * H:3 * H]), sigmoid(g[3 * H:4 * H])
                c = f * c + i * gg
                h = o * np.tanh(c)
                out[b, t] = h
            last[b] = h
        return out, last

    of, lf = run_dir(params["w_ih_f"], params["w_hh_f"], params["b_ih_f"], params["b_hh_f"], False)
    ob, lb = run_dir(params["w_ih_b"], params["w_hh_b"], params["b_ih_b"], params["b_hh_b"], True)
    return np.concatenate([of, ob], -1), np.concatenate([lf, lb], -1)


if __name__ == "__main__":
    B, T = 2, 8                 # batch of sketches, max sketch length
    VOCAB = 16                  # synthetic vocab: specials + operators
    EMBED = 32                  # sketch_decoder_token_embed_size (small)
    OUTPUT_SIZE = 32            # en_embedding_size (small); H = 16 per direction

    key = jax.random.PRNGKey(0)
    pkey, tkey, vkey = jax.random.split(key, 3)
    params = init_params(pkey, VOCAB, EMBED, OUTPUT_SIZE)

    lengths = jnp.array([T, 5], dtype=jnp.int32)                 # sketch_lens
    token_id = jax.random.randint(tkey, (B, T), 0, VOCAB, dtype=jnp.int32)
    tmask = jnp.arange(T)[None, :] < lengths[:, None]
    token_id = jnp.where(tmask, token_id, 0)                     # padded slots -> 0 (as in to_input_tensor)
    var_mask = ((jax.random.uniform(vkey, (B, T)) < 0.3) & tmask).astype(jnp.float32)

    fwd = jax.jit(sketch_encoder_forward)
    out = fwd(params, token_id, lengths, var_mask)
    out = jax.tree_util.tree_map(jax.block_until_ready, out)

    # Tolerance accounts for the bf16 recurrent matmul operands (f32 accumulation).
    ref_value, ref_last = _ref_forward(params, token_id, np.asarray(lengths))
    np.testing.assert_allclose(np.asarray(out["value"]), ref_value, rtol=2e-2, atol=2e-2)
    np.testing.assert_allclose(np.asarray(out["last_state"]), ref_last, rtol=2e-2, atol=2e-2)
    assert out["value"].shape == (B, T, OUTPUT_SIZE)
    assert out["last_state"].shape == (B, OUTPUT_SIZE)
    assert out["mask"].shape == (B, T)

    print("KERNEL_OK")
</pallas_src>

<mosaic_0001>
module attributes {stable_mosaic.version = 11 : i64} {
  func.func @_bilstm_kernel(%arg0: memref<8x8x128xf32, #tpu.memory_space<vmem>>, %arg1: memref<8x1xi32, #tpu.memory_space<vmem>>, %arg2: memref<32x128xbf16, #tpu.memory_space<vmem>>, %arg3: memref<8x8x32xf32, #tpu.memory_space<vmem>>, %arg4: memref<8x32xf32, #tpu.memory_space<vmem>>) attributes {dimension_semantics = [], scalar_prefetch = 0 : i64, scratch_operands = 0 : i64, tpu.core_type = #tpu.core_type<tc>} {
    %c0 = arith.constant 0 : index
    %c0_0 = arith.constant 0 : index
    %0 = vector.load %arg2[%c0, %c0_0] : memref<32x128xbf16, #tpu.memory_space<vmem>>, vector<32x128xbf16>
    %c0_1 = arith.constant 0 : index
    %c0_2 = arith.constant 0 : index
    %1 = vector.load %arg1[%c0_1, %c0_2] : memref<8x1xi32, #tpu.memory_space<vmem>>, vector<8x1xi32>
    %2 = vector.shape_cast %1 : vector<8x1xi32> to vector<8x1xi32>
    %3 = vector.broadcast %2 : vector<8x1xi32> to vector<8x32xi32>
    %4 = tpu.iota {dimensions = array<i32: 1>} : vector<8x128xi32>
    %c32_i32 = arith.constant 32 : i32
    %c0_i32 = arith.constant 0 : i32
    %5 = arith.cmpi eq, %c32_i32, %c0_i32 : i32
    %c1_i32 = arith.constant 1 : i32
    %6 = arith.select %5, %c1_i32, %c32_i32 : i32
    %7 = vector.broadcast %6 : i32 to vector<8x128xi32>
    %8 = arith.remsi %4, %7 : vector<8x128xi32>
    %c0_i32_3 = arith.constant 0 : i32
    %9 = vector.broadcast %c0_i32_3 : i32 to vector<8x128xi32>
    %10 = arith.cmpi ne, %8, %9 : vector<8x128xi32>
    %c0_i32_4 = arith.constant 0 : i32
    %11 = vector.broadcast %c0_i32_4 : i32 to vector<8x128xi32>
    %12 = arith.cmpi slt, %8, %11 : vector<8x128xi32>
    %c0_i32_5 = arith.constant 0 : i32
    %13 = arith.cmpi slt, %6, %c0_i32_5 : i32
    %14 = vector.broadcast %13 : i1 to vector<8x128xi1>
    %15 = vector.broadcast %14 : vector<8x128xi1> to vector<8x128xi1>
    %16 = arith.xori %12, %15 : vector<8x128xi1>
    %17 = arith.andi %16, %10 : vector<8x128xi1>
    %18 = vector.broadcast %6 : i32 to vector<8x128xi32>
    %19 = arith.addi %8, %18 : vector<8x128xi32>
    %20 = arith.select %17, %19, %8 : vector<8x128xi1>, vector<8x128xi32>
    %c16_i32 = arith.constant 16 : i32
    %21 = vector.broadcast %c16_i32 : i32 to vector<8x128xi32>
    %22 = arith.cmpi slt, %20, %21 : vector<8x128xi32>
    %23 = tpu.iota {dimensions = array<i32: 1>} : vector<8x32xi32>
    %c16_i32_6 = arith.constant 16 : i32
    %24 = vector.broadcast %c16_i32_6 : i32 to vector<8x32xi32>
    %25 = arith.cmpi slt, %23, %24 : vector<8x32xi32>
    %cst = arith.constant 0.000000e+00 : f32
    %26 = vector.broadcast %cst : f32 to vector<8x32xf32>
    %cst_7 = arith.constant 0.000000e+00 : f32
    %27 = vector.broadcast %cst_7 : f32 to vector<8x32xf32>
    %c0_8 = arith.constant 0 : index
    %c0_9 = arith.constant 0 : index
    %c0_10 = arith.constant 0 : index
    %28 = vector.load %arg0[%c0_8, %c0_9, %c0_10] : memref<8x8x128xf32, #tpu.memory_space<vmem>>, vector<1x8x128xf32>
    %29 = vector.shape_cast %28 : vector<1x8x128xf32> to vector<8x128xf32>
    %c7 = arith.constant 7 : index
    %c0_11 = arith.constant 0 : index
    %c0_12 = arith.constant 0 : index
    %30 = vector.load %arg0[%c7, %c0_11, %c0_12] : memref<8x8x128xf32, #tpu.memory_space<vmem>>, vector<1x8x128xf32>
    %31 = vector.shape_cast %30 : vector<1x8x128xf32> to vector<8x128xf32>
    %32 = arith.select %22, %29, %31 : vector<8x128xi1>, vector<8x128xf32>
    %33 = arith.truncf %26 : vector<8x32xf32> to vector<8x32xbf16>
    %cst_13 = arith.constant dense<0.000000e+00> : vector<8x128xf32>
    %34 = tpu.matmul %33, %0, %cst_13 {dimension_numbers = #tpu.dot_dimension_numbers<[1], [0], [0], [1], [0, 0, 1, 1], [], []>} : vector<8x32xbf16>, vector<32x128xbf16>, vector<8x128xf32> -> vector<8x128xf32>
    %35 = arith.addf %32, %34 : vector<8x128xf32>
    %36 = vector.extract_strided_slice %35 {offsets = [0, 0], sizes = [8, 32], strides = [1, 1]} : vector<8x128xf32> to vector<8x32xf32>
    %37 = arith.negf %36 : vector<8x32xf32>
    %38 = math.exp %37 : vector<8x32xf32>
    %cst_14 = arith.constant 1.000000e+00 : f32
    %39 = vector.broadcast %cst_14 : f32 to vector<8x32xf32>
    %40 = arith.addf %39, %38 : vector<8x32xf32>
    %41 = arith.divf %39, %40 : vector<8x32xf32>
    %42 = vector.extract_strided_slice %35 {offsets = [0, 32], sizes = [8, 32], strides = [1, 1]} : vector<8x128xf32> to vector<8x32xf32>
    %43 = arith.negf %42 : vector<8x32xf32>
    %44 = math.exp %43 : vector<8x32xf32>
    %cst_15 = arith.constant 1.000000e+00 : f32
    %45 = vector.broadcast %cst_15 : f32 to vector<8x32xf32>
    %46 = arith.addf %45, %44 : vector<8x32xf32>
    %47 = arith.divf %45, %46 : vector<8x32xf32>
    %48 = vector.extract_strided_slice %35 {offsets = [0, 64], sizes = [8, 32], strides = [1, 1]} : vector<8x128xf32> to vector<8x32xf32>
    %49 = math.tanh %48 : vector<8x32xf32>
    %50 = vector.extract_strided_slice %35 {offsets = [0, 96], sizes = [8, 32], strides = [1, 1]} : vector<8x128xf32> to vector<8x32xf32>
    %51 = arith.negf %50 : vector<8x32xf32>
    %52 = math.exp %51 : vector<8x32xf32>
    %cst_16 = arith.constant 1.000000e+00 : f32
    %53 = vector.broadcast %cst_16 : f32 to vector<8x32xf32>
    %54 = arith.addf %53, %52 : vector<8x32xf32>
    %55 = arith.divf %53, %54 : vector<8x32xf32>
    %56 = arith.mulf %47, %27 : vector<8x32xf32>
    %57 = arith.mulf %41, %49 : vector<8x32xf32>
    %58 = arith.addf %56, %57 : vector<8x32xf32>
    %59 = math.tanh %58 : vector<8x32xf32>
    %60 = arith.mulf %55, %59 : vector<8x32xf32>
    %c0_i32_17 = arith.constant 0 : i32
    %c7_i32 = arith.constant 7 : i32
    %61 = vector.broadcast %c0_i32_17 : i32 to vector<8x32xi32>
    %62 = vector.broadcast %c7_i32 : i32 to vector<8x32xi32>
    %63 = arith.select %25, %61, %62 : vector<8x32xi1>, vector<8x32xi32>
    %64 = arith.cmpi slt, %63, %3 : vector<8x32xi32>
    %cst_18 = arith.constant 0.000000e+00 : f32
    %65 = vector.broadcast %cst_18 : f32 to vector<8x32xf32>
    %66 = arith.select %64, %60, %65 : vector<8x32xi1>, vector<8x32xf32>
    %67 = vector.extract_strided_slice %66 {offsets = [0, 0], sizes = [8, 16], strides = [1, 1]} : vector<8x32xf32> to vector<8x16xf32>
    %68 = vector.shape_cast %67 : vector<8x16xf32> to vector<8x1x16xf32>
    %c0_19 = arith.constant 0 : index
    %c0_20 = arith.constant 0 : index
    %c0_21 = arith.constant 0 : index
    %69 = vector.load %arg3[%c0_19, %c0_20, %c0_21] : memref<8x8x32xf32, #tpu.memory_space<vmem>>, vector<8x1x16xf32>
    tpu.vector_store %arg3[%c0_19, %c0_20, %c0_21], %68 {strides = array<i32>} : memref<8x8x32xf32, #tpu.memory_space<vmem>>, vector<8x1x16xf32>,
    %70 = vector.extract_strided_slice %66 {offsets = [0, 16], sizes = [8, 16], strides = [1, 1]} : vector<8x32xf32> to vector<8x16xf32>
    %71 = vector.shape_cast %70 : vector<8x16xf32> to vector<8x1x16xf32>
    %c0_22 = arith.constant 0 : index
    %c7_23 = arith.constant 7 : index
    %c16 = arith.constant 16 : index
    %72 = vector.load %arg3[%c0_22, %c7_23, %c16] : memref<8x8x32xf32, #tpu.memory_space<vmem>>, vector<8x1x16xf32>
    tpu.vector_store %arg3[%c0_22, %c7_23, %c16], %71 {strides = array<i32>} : memref<8x8x32xf32, #tpu.memory_space<vmem>>, vector<8x1x16xf32>,
    %73 = arith.select %64, %60, %26 : vector<8x32xi1>, vector<8x32xf32>
    %74 = arith.select %64, %58, %27 : vector<8x32xi1>, vector<8x32xf32>
    %c1 = arith.constant 1 : index
    %c0_24 = arith.constant 0 : index
    %c0_25 = arith.constant 0 : index
    %75 = vector.load %arg0[%c1, %c0_24, %c0_25] : memref<8x8x128xf32, #tpu.memory_space<vmem>>, vector<1x8x128xf32>
    %76 = vector.shape_cast %75 : vector<1x8x128xf32> to vector<8x128xf32>
    %c6 = arith.constant 6 : index
    %c0_26 = arith.constant 0 : index
    %c0_27 = arith.constant 0 : index
    %77 = vector.load %arg0[%c6, %c0_26, %c0_27] : memref<8x8x128xf32, #tpu.memory_space<vmem>>, vector<1x8x128xf32>
    %78 = vector.shape_cast %77 : vector<1x8x128xf32> to vector<8x128xf32>
    %79 = arith.select %22, %76, %78 : vector<8x128xi1>, vector<8x128xf32>
    %80 = arith.truncf %73 : vector<8x32xf32> to vector<8x32xbf16>
    %cst_28 = arith.constant dense<0.000000e+00> : vector<8x128xf32>
    %81 = tpu.matmul %80, %0, %cst_28 {dimension_numbers = #tpu.dot_dimension_numbers<[1], [0], [0], [1], [0, 0, 1, 1], [], []>} : vector<8x32xbf16>, vector<32x128xbf16>, vector<8x128xf32> -> vector<8x128xf32>
    %82 = arith.addf %79, %81 : vector<8x128xf32>
    %83 = vector.extract_strided_slice %82 {offsets = [0, 0], sizes = [8, 32], strides = [1, 1]} : vector<8x128xf32> to vector<8x32xf32>
    %84 = arith.negf %83 : vector<8x32xf32>
    %85 = math.exp %84 : vector<8x32xf32>
    %cst_29 = arith.constant 1.000000e+00 : f32
    %86 = vector.broadcast %cst_29 : f32 to vector<8x32xf32>
    %87 = arith.addf %86, %85 : vector<8x32xf32>
    %88 = arith.divf %86, %87 : vector<8x32xf32>
    %89 = vector.extract_strided_slice %82 {offsets = [0, 32], sizes = [8, 32], strides = [1, 1]} : vector<8x128xf32> to vector<8x32xf32>
    %90 = arith.negf %89 : vector<8x32xf32>
    %91 = math.exp %90 : vector<8x32xf32>
    %cst_30 = arith.constant 1.000000e+00 : f32
    %92 = vector.broadcast %cst_30 : f32 to vector<8x32xf32>
    %93 = arith.addf %92, %91 : vector<8x32xf32>
    %94 = arith.divf %92, %93 : vector<8x32xf32>
    %95 = vector.extract_strided_slice %82 {offsets = [0, 64], sizes = [8, 32], strides = [1, 1]} : vector<8x128xf32> to vector<8x32xf32>
    %96 = math.tanh %95 : vector<8x32xf32>
    %97 = vector.extract_strided_slice %82 {offsets = [0, 96], sizes = [8, 32], strides = [1, 1]} : vector<8x128xf32> to vector<8x32xf32>
    %98 = arith.negf %97 : vector<8x32xf32>
    %99 = math.exp %98 : vector<8x32xf32>
    %cst_31 = arith.constant 1.000000e+00 : f32
    %100 = vector.broadcast %cst_31 : f32 to vector<8x32xf32>
    %101 = arith.addf %100, %99 : vector<8x32xf32>
    %102 = arith.divf %100, %101 : vector<8x32xf32>
    %103 = arith.mulf %94, %74 : vector<8x32xf32>
    %104 = arith.mulf %88, %96 : vector<8x32xf32>
    %105 = arith.addf %103, %104 : vector<8x32xf32>
    %106 = math.tanh %105 : vector<8x32xf32>
    %107 = arith.mulf %102, %106 : vector<8x32xf32>
    %c1_i32_32 = arith.constant 1 : i32
    %c6_i32 = arith.constant 6 : i32
    %108 = vector.broadcast %c1_i32_32 : i32 to vector<8x32xi32>
    %109 = vector.broadcast %c6_i32 : i32 to vector<8x32xi32>
    %110 = arith.select %25, %108, %109 : vector<8x32xi1>, vector<8x32xi32>
    %111 = arith.cmpi slt, %110, %3 : vector<8x32xi32>
    %cst_33 = arith.constant 0.000000e+00 : f32
    %112 = vector.broadcast %cst_33 : f32 to vector<8x32xf32>
    %113 = arith.select %111, %107, %112 : vector<8x32xi1>, vector<8x32xf32>
    %114 = vector.extract_strided_slice %113 {offsets = [0, 0], sizes = [8, 16], strides = [1, 1]} : vector<8x32xf32> to vector<8x16xf32>
    %115 = vector.shape_cast %114 : vector<8x16xf32> to vector<8x1x16xf32>
    %c0_34 = arith.constant 0 : index
    %c1_35 = arith.constant 1 : index
    %c0_36 = arith.constant 0 : index
    %116 = vector.load %arg3[%c0_34, %c1_35, %c0_36] : memref<8x8x32xf32, #tpu.memory_space<vmem>>, vector<8x1x16xf32>
    tpu.vector_store %arg3[%c0_34, %c1_35, %c0_36], %115 {strides = array<i32>} : memref<8x8x32xf32, #tpu.memory_space<vmem>>, vector<8x1x16xf32>,
    %117 = vector.extract_strided_slice %113 {offsets = [0, 16], sizes = [8, 16], strides = [1, 1]} : vector<8x32xf32> to vector<8x16xf32>
    %118 = vector.shape_cast %117 : vector<8x16xf32> to vector<8x1x16xf32>
    %c0_37 = arith.constant 0 : index
    %c6_38 = arith.constant 6 : index
    %c16_39 = arith.constant 16 : index
    %119 = vector.load %arg3[%c0_37, %c6_38, %c16_39] : memref<8x8x32xf32, #tpu.memory_space<vmem>>, vector<8x1x16xf32>
    tpu.vector_store %arg3[%c0_37, %c6_38, %c16_39], %118 {strides = array<i32>} : memref<8x8x32xf32, #tpu.memory_space<vmem>>, vector<8x1x16xf32>,
    %120 = arith.select %111, %107, %73 : vector<8x32xi1>, vector<8x32xf32>
    %121 = arith.select %111, %105, %74 : vector<8x32xi1>, vector<8x32xf32>
    %c2 = arith.constant 2 : index
    %c0_40 = arith.constant 0 : index
    %c0_41 = arith.constant 0 : index
    %122 = vector.load %arg0[%c2, %c0_40, %c0_41] : memref<8x8x128xf32, #tpu.memory_space<vmem>>, vector<1x8x128xf32>
    %123 = vector.shape_cast %122 : vector<1x8x128xf32> to vector<8x128xf32>
    %c5 = arith.constant 5 : index
    %c0_42 = arith.constant 0 : index
    %c0_43 = arith.constant 0 : index
    %124 = vector.load %arg0[%c5, %c0_42, %c0_43] : memref<8x8x128xf32, #tpu.memory_space<vmem>>, vector<1x8x128xf32>
    %125 = vector.shape_cast %124 : vector<1x8x128xf32> to vector<8x128xf32>
    %126 = arith.select %22, %123, %125 : vector<8x128xi1>, vector<8x128xf32>
    %127 = arith.truncf %120 : vector<8x32xf32> to vector<8x32xbf16>
    %cst_44 = arith.constant dense<0.000000e+00> : vector<8x128xf32>
    %128 = tpu.matmul %127, %0, %cst_44 {dimension_numbers = #tpu.dot_dimension_numbers<[1], [0], [0], [1], [0, 0, 1, 1], [], []>} : vector<8x32xbf16>, vector<32x128xbf16>, vector<8x128xf32> -> vector<8x128xf32>
    %129 = arith.addf %126, %128 : vector<8x128xf32>
    %130 = vector.extract_strided_slice %129 {offsets = [0, 0], sizes = [8, 32], strides = [1, 1]} : vector<8x128xf32> to vector<8x32xf32>
    %131 = arith.negf %130 : vector<8x32xf32>
    %132 = math.exp %131 : vector<8x32xf32>
    %cst_45 = arith.constant 1.000000e+00 : f32
    %133 = vector.broadcast %cst_45 : f32 to vector<8x32xf32>
    %134 = arith.addf %133, %132 : vector<8x32xf32>
    %135 = arith.divf %133, %134 : vector<8x32xf32>
    %136 = vector.extract_strided_slice %129 {offsets = [0, 32], sizes = [8, 32], strides = [1, 1]} : vector<8x128xf32> to vector<8x32xf32>
    %137 = arith.negf %136 : vector<8x32xf32>
    %138 = math.exp %137 : vector<8x32xf32>
    %cst_46 = arith.constant 1.000000e+00 : f32
    %139 = vector.broadcast %cst_46 : f32 to vector<8x32xf32>
    %140 = arith.addf %139, %138 : vector<8x32xf32>
    %141 = arith.divf %139, %140 : vector<8x32xf32>
    %142 = vector.extract_strided_slice %129 {offsets = [0, 64], sizes = [8, 32], strides = [1, 1]} : vector<8x128xf32> to vector<8x32xf32>
    %143 = math.tanh %142 : vector<8x32xf32>
    %144 = vector.extract_strided_slice %129 {offsets = [0, 96], sizes = [8, 32], strides = [1, 1]} : vector<8x128xf32> to vector<8x32xf32>
    %145 = arith.negf %144 : vector<8x32xf32>
    %146 = math.exp %145 : vector<8x32xf32>
    %cst_47 = arith.constant 1.000000e+00 : f32
    %147 = vector.broadcast %cst_47 : f32 to vector<8x32xf32>
    %148 = arith.addf %147, %146 : vector<8x32xf32>
    %149 = arith.divf %147, %148 : vector<8x32xf32>
    %150 = arith.mulf %141, %121 : vector<8x32xf32>
    %151 = arith.mulf %135, %143 : vector<8x32xf32>
    %152 = arith.addf %150, %151 : vector<8x32xf32>
    %153 = math.tanh %152 : vector<8x32xf32>
    %154 = arith.mulf %149, %153 : vector<8x32xf32>
    %c2_i32 = arith.constant 2 : i32
    %c5_i32 = arith.constant 5 : i32
    %155 = vector.broadcast %c2_i32 : i32 to vector<8x32xi32>
    %156 = vector.broadcast %c5_i32 : i32 to vector<8x32xi32>
    %157 = arith.select %25, %155, %156 : vector<8x32xi1>, vector<8x32xi32>
    %158 = arith.cmpi slt, %157, %3 : vector<8x32xi32>
    %cst_48 = arith.constant 0.000000e+00 : f32
    %159 = vector.broadcast %cst_48 : f32 to vector<8x32xf32>
    %160 = arith.select %158, %154, %159 : vector<8x32xi1>, vector<8x32xf32>
    %161 = vector.extract_strided_slice %160 {offsets = [0, 0], sizes = [8, 16], strides = [1, 1]} : vector<8x32xf32> to vector<8x16xf32>
    %162 = vector.shape_cast %161 : vector<8x16xf32> to vector<8x1x16xf32>
    %c0_49 = arith.constant 0 : index
    %c2_50 = arith.constant 2 : index
    %c0_51 = arith.constant 0 : index
    %163 = vector.load %arg3[%c0_49, %c2_50, %c0_51] : memref<8x8x32xf32, #tpu.memory_space<vmem>>, vector<8x1x16xf32>
    tpu.vector_store %arg3[%c0_49, %c2_50, %c0_51], %162 {strides = array<i32>} : memref<8x8x32xf32, #tpu.memory_space<vmem>>, vector<8x1x16xf32>,
    %164 = vector.extract_strided_slice %160 {offsets = [0, 16], sizes = [8, 16], strides = [1, 1]} : vector<8x32xf32> to vector<8x16xf32>
    %165 = vector.shape_cast %164 : vector<8x16xf32> to vector<8x1x16xf32>
    %c0_52 = arith.constant 0 : index
    %c5_53 = arith.constant 5 : index
    %c16_54 = arith.constant 16 : index
    %166 = vector.load %arg3[%c0_52, %c5_53, %c16_54] : memref<8x8x32xf32, #tpu.memory_space<vmem>>, vector<8x1x16xf32>
    tpu.vector_store %arg3[%c0_52, %c5_53, %c16_54], %165 {strides = array<i32>} : memref<8x8x32xf32, #tpu.memory_space<vmem>>, vector<8x1x16xf32>,
    %167 = arith.select %158, %154, %120 : vector<8x32xi1>, vector<8x32xf32>
    %168 = arith.select %158, %152, %121 : vector<8x32xi1>, vector<8x32xf32>
    %c3 = arith.constant 3 : index
    %c0_55 = arith.constant 0 : index
    %c0_56 = arith.constant 0 : index
    %169 = vector.load %arg0[%c3, %c0_55, %c0_56] : memref<8x8x128xf32, #tpu.memory_space<vmem>>, vector<1x8x128xf32>
    %170 = vector.shape_cast %169 : vector<1x8x128xf32> to vector<8x128xf32>
    %c4 = arith.constant 4 : index
    %c0_57 = arith.constant 0 : index
    %c0_58 = arith.constant 0 : index
    %171 = vector.load %arg0[%c4, %c0_57, %c0_58] : memref<8x8x128xf32, #tpu.memory_space<vmem>>, vector<1x8x128xf32>
    %172 = vector.shape_cast %171 : vector<1x8x128xf32> to vector<8x128xf32>
    %173 = arith.select %22, %170, %172 : vector<8x128xi1>, vector<8x128xf32>
    %174 = arith.truncf %167 : vector<8x32xf32> to vector<8x32xbf16>
    %cst_59 = arith.constant dense<0.000000e+00> : vector<8x128xf32>
    %175 = tpu.matmul %174, %0, %cst_59 {dimension_numbers = #tpu.dot_dimension_numbers<[1], [0], [0], [1], [0, 0, 1, 1], [], []>} : vector<8x32xbf16>, vector<32x128xbf16>, vector<8x128xf32> -> vector<8x128xf32>
    %176 = arith.addf %173, %175 : vector<8x128xf32>
    %177 = vector.extract_strided_slice %176 {offsets = [0, 0], sizes = [8, 32], strides = [1, 1]} : vector<8x128xf32> to vector<8x32xf32>
    %178 = arith.negf %177 : vector<8x32xf32>
    %179 = math.exp %178 : vector<8x32xf32>
    %cst_60 = arith.constant 1.000000e+00 : f32
    %180 = vector.broadcast %cst_60 : f32 to vector<8x32xf32>
    %181 = arith.addf %180, %179 : vector<8x32xf32>
    %182 = arith.divf %180, %181 : vector<8x32xf32>
    %183 = vector.extract_strided_slice %176 {offsets = [0, 32], sizes = [8, 32], strides = [1, 1]} : vector<8x128xf32> to vector<8x32xf32>
    %184 = arith.negf %183 : vector<8x32xf32>
    %185 = math.exp %184 : vector<8x32xf32>
    %cst_61 = arith.constant 1.000000e+00 : f32
    %186 = vector.broadcast %cst_61 : f32 to vector<8x32xf32>
    %187 = arith.addf %186, %185 : vector<8x32xf32>
    %188 = arith.divf %186, %187 : vector<8x32xf32>
    %189 = vector.extract_strided_slice %176 {offsets = [0, 64], sizes = [8, 32], strides = [1, 1]} : vector<8x128xf32> to vector<8x32xf32>
    %190 = math.tanh %189 : vector<8x32xf32>
    %191 = vector.extract_strided_slice %176 {offsets = [0, 96], sizes = [8, 32], strides = [1, 1]} : vector<8x128xf32> to vector<8x32xf32>
    %192 = arith.negf %191 : vector<8x32xf32>
    %193 = math.exp %192 : vector<8x32xf32>
    %cst_62 = arith.constant 1.000000e+00 : f32
    %194 = vector.broadcast %cst_62 : f32 to vector<8x32xf32>
    %195 = arith.addf %194, %193 : vector<8x32xf32>
    %196 = arith.divf %194, %195 : vector<8x32xf32>
    %197 = arith.mulf %188, %168 : vector<8x32xf32>
    %198 = arith.mulf %182, %190 : vector<8x32xf32>
    %199 = arith.addf %197, %198 : vector<8x32xf32>
    %200 = math.tanh %199 : vector<8x32xf32>
    %201 = arith.mulf %196, %200 : vector<8x32xf32>
    %c3_i32 = arith.constant 3 : i32
    %c4_i32 = arith.constant 4 : i32
    %202 = vector.broadcast %c3_i32 : i32 to vector<8x32xi32>
    %203 = vector.broadcast %c4_i32 : i32 to vector<8x32xi32>
    %204 = arith.select %25, %202, %203 : vector<8x32xi1>, vector<8x32xi32>
    %205 = arith.cmpi slt, %204, %3 : vector<8x32xi32>
    %cst_63 = arith.constant 0.000000e+00 : f32
    %206 = vector.broadcast %cst_63 : f32 to vector<8x32xf32>
    %207 = arith.select %205, %201, %206 : vector<8x32xi1>, vector<8x32xf32>
    %208 = vector.extract_strided_slice %207 {offsets = [0, 0], sizes = [8, 16], strides = [1, 1]} : vector<8x32xf32> to vector<8x16xf32>
    %209 = vector.shape_cast %208 : vector<8x16xf32> to vector<8x1x16xf32>
    %c0_64 = arith.constant 0 : index
    %c3_65 = arith.constant 3 : index
    %c0_66 = arith.constant 0 : index
    %210 = vector.load %arg3[%c0_64, %c3_65, %c0_66] : memref<8x8x32xf32, #tpu.memory_space<vmem>>, vector<8x1x16xf32>
    tpu.vector_store %arg3[%c0_64, %c3_65, %c0_66], %209 {strides = array<i32>} : memref<8x8x32xf32, #tpu.memory_space<vmem>>, vector<8x1x16xf32>,
    %211 = vector.extract_strided_slice %207 {offsets = [0, 16], sizes = [8, 16], strides = [1, 1]} : vector<8x32xf32> to vector<8x16xf32>
    %212 = vector.shape_cast %211 : vector<8x16xf32> to vector<8x1x16xf32>
    %c0_67 = arith.constant 0 : index
    %c4_68 = arith.constant 4 : index
    %c16_69 = arith.constant 16 : index
    %213 = vector.load %arg3[%c0_67, %c4_68, %c16_69] : memref<8x8x32xf32, #tpu.memory_space<vmem>>, vector<8x1x16xf32>
    tpu.vector_store %arg3[%c0_67, %c4_68, %c16_69], %212 {strides = array<i32>} : memref<8x8x32xf32, #tpu.memory_space<vmem>>, vector<8x1x16xf32>,
    %214 = arith.select %205, %201, %167 : vector<8x32xi1>, vector<8x32xf32>
    %215 = arith.select %205, %199, %168 : vector<8x32xi1>, vector<8x32xf32>
    %c4_70 = arith.constant 4 : index
    %c0_71 = arith.constant 0 : index
    %c0_72 = arith.constant 0 : index
    %216 = vector.load %arg0[%c4_70, %c0_71, %c0_72] : memref<8x8x128xf32, #tpu.memory_space<vmem>>, vector<1x8x128xf32>
    %217 = vector.shape_cast %216 : vector<1x8x128xf32> to vector<8x128xf32>
    %c3_73 = arith.constant 3 : index
    %c0_74 = arith.constant 0 : index
    %c0_75 = arith.constant 0 : index
    %218 = vector.load %arg0[%c3_73, %c0_74, %c0_75] : memref<8x8x128xf32, #tpu.memory_space<vmem>>, vector<1x8x128xf32>
    %219 = vector.shape_cast %218 : vector<1x8x128xf32> to vector<8x128xf32>
    %220 = arith.select %22, %217, %219 : vector<8x128xi1>, vector<8x128xf32>
    %221 = arith.truncf %214 : vector<8x32xf32> to vector<8x32xbf16>
    %cst_76 = arith.constant dense<0.000000e+00> : vector<8x128xf32>
    %222 = tpu.matmul %221, %0, %cst_76 {dimension_numbers = #tpu.dot_dimension_numbers<[1], [0], [0], [1], [0, 0, 1, 1], [], []>} : vector<8x32xbf16>, vector<32x128xbf16>, vector<8x128xf32> -> vector<8x128xf32>
    %223 = arith.addf %220, %222 : vector<8x128xf32>
    %224 = vector.extract_strided_slice %223 {offsets = [0, 0], sizes = [8, 32], strides = [1, 1]} : vector<8x128xf32> to vector<8x32xf32>
    %225 = arith.negf %224 : vector<8x32xf32>
    %226 = math.exp %225 : vector<8x32xf32>
    %cst_77 = arith.constant 1.000000e+00 : f32
    %227 = vector.broadcast %cst_77 : f32 to vector<8x32xf32>
    %228 = arith.addf %227, %226 : vector<8x32xf32>
    %229 = arith.divf %227, %228 : vector<8x32xf32>
    %230 = vector.extract_strided_slice %223 {offsets = [0, 32], sizes = [8, 32], strides = [1, 1]} : vector<8x128xf32> to vector<8x32xf32>
    %231 = arith.negf %230 : vector<8x32xf32>
    %232 = math.exp %231 : vector<8x32xf32>
    %cst_78 = arith.constant 1.000000e+00 : f32
    %233 = vector.broadcast %cst_78 : f32 to vector<8x32xf32>
    %234 = arith.addf %233, %232 : vector<8x32xf32>
    %235 = arith.divf %233, %234 : vector<8x32xf32>
    %236 = vector.extract_strided_slice %223 {offsets = [0, 64], sizes = [8, 32], strides = [1, 1]} : vector<8x128xf32> to vector<8x32xf32>
    %237 = math.tanh %236 : vector<8x32xf32>
    %238 = vector.extract_strided_slice %223 {offsets = [0, 96], sizes = [8, 32], strides = [1, 1]} : vector<8x128xf32> to vector<8x32xf32>
    %239 = arith.negf %238 : vector<8x32xf32>
    %240 = math.exp %239 : vector<8x32xf32>
    %cst_79 = arith.constant 1.000000e+00 : f32
    %241 = vector.broadcast %cst_79 : f32 to vector<8x32xf32>
    %242 = arith.addf %241, %240 : vector<8x32xf32>
    %243 = arith.divf %241, %242 : vector<8x32xf32>
    %244 = arith.mulf %235, %215 : vector<8x32xf32>
    %245 = arith.mulf %229, %237 : vector<8x32xf32>
    %246 = arith.addf %244, %245 : vector<8x32xf32>
    %247 = math.tanh %246 : vector<8x32xf32>
    %248 = arith.mulf %243, %247 : vector<8x32xf32>
    %c4_i32_80 = arith.constant 4 : i32
    %c3_i32_81 = arith.constant 3 : i32
    %249 = vector.broadcast %c4_i32_80 : i32 to vector<8x32xi32>
    %250 = vector.broadcast %c3_i32_81 : i32 to vector<8x32xi32>
    %251 = arith.select %25, %249, %250 : vector<8x32xi1>, vector<8x32xi32>
    %252 = arith.cmpi slt, %251, %3 : vector<8x32xi32>
    %cst_82 = arith.constant 0.000000e+00 : f32
    %253 = vector.broadcast %cst_82 : f32 to vector<8x32xf32>
    %254 = arith.select %252, %248, %253 : vector<8x32xi1>, vector<8x32xf32>
    %255 = vector.extract_strided_slice %254 {offsets = [0, 0], sizes = [8, 16], strides = [1, 1]} : vector<8x32xf32> to vector<8x16xf32>
    %256 = vector.shape_cast %255 : vector<8x16xf32> to vector<8x1x16xf32>
    %c0_83 = arith.constant 0 : index
    %c4_84 = arith.constant 4 : index
    %c0_85 = arith.constant 0 : index
    %257 = vector.load %arg3[%c0_83, %c4_84, %c0_85] : memref<8x8x32xf32, #tpu.memory_space<vmem>>, vector<8x1x16xf32>
    tpu.vector_store %arg3[%c0_83, %c4_84, %c0_85], %256 {strides = array<i32>} : memref<8x8x32xf32, #tpu.memory_space<vmem>>, vector<8x1x16xf32>,
    %258 = vector.extract_strided_slice %254 {offsets = [0, 16], sizes = [8, 16], strides = [1, 1]} : vector<8x32xf32> to vector<8x16xf32>
    %259 = vector.shape_cast %258 : vector<8x16xf32> to vector<8x1x16xf32>
    %c0_86 = arith.constant 0 : index
    %c3_87 = arith.constant 3 : index
    %c16_88 = arith.constant 16 : index
    %260 = vector.load %arg3[%c0_86, %c3_87, %c16_88] : memref<8x8x32xf32, #tpu.memory_space<vmem>>, vector<8x1x16xf32>
    tpu.vector_store %arg3[%c0_86, %c3_87, %c16_88], %259 {strides = array<i32>} : memref<8x8x32xf32, #tpu.memory_space<vmem>>, vector<8x1x16xf32>,
    %261 = arith.select %252, %248, %214 : vector<8x32xi1>, vector<8x32xf32>
    %262 = arith.select %252, %246, %215 : vector<8x32xi1>, vector<8x32xf32>
    %c5_89 = arith.constant 5 : index
    %c0_90 = arith.constant 0 : index
    %c0_91 = arith.constant 0 : index
    %263 = vector.load %arg0[%c5_89, %c0_90, %c0_91] : memref<8x8x128xf32, #tpu.memory_space<vmem>>, vector<1x8x128xf32>
    %264 = vector.shape_cast %263 : vector<1x8x128xf32> to vector<8x128xf32>
    %c2_92 = arith.constant 2 : index
    %c0_93 = arith.constant 0 : index
    %c0_94 = arith.constant 0 : index
    %265 = vector.load %arg0[%c2_92, %c0_93, %c0_94] : memref<8x8x128xf32, #tpu.memory_space<vmem>>, vector<1x8x128xf32>
    %266 = vector.shape_cast %265 : vector<1x8x128xf32> to vector<8x128xf32>
    %267 = arith.select %22, %264, %266 : vector<8x128xi1>, vector<8x128xf32>
    %268 = arith.truncf %261 : vector<8x32xf32> to vector<8x32xbf16>
    %cst_95 = arith.constant dense<0.000000e+00> : vector<8x128xf32>
    %269 = tpu.matmul %268, %0, %cst_95 {dimension_numbers = #tpu.dot_dimension_numbers<[1], [0], [0], [1], [0, 0, 1, 1], [], []>} : vector<8x32xbf16>, vector<32x128xbf16>, vector<8x128xf32> -> vector<8x128xf32>
    %270 = arith.addf %267, %269 : vector<8x128xf32>
    %271 = vector.extract_strided_slice %270 {offsets = [0, 0], sizes = [8, 32], strides = [1, 1]} : vector<8x128xf32> to vector<8x32xf32>
    %272 = arith.negf %271 : vector<8x32xf32>
    %273 = math.exp %272 : vector<8x32xf32>
    %cst_96 = arith.constant 1.000000e+00 : f32
    %274 = vector.broadcast %cst_96 : f32 to vector<8x32xf32>
    %275 = arith.addf %274, %273 : vector<8x32xf32>
    %276 = arith.divf %274, %275 : vector<8x32xf32>
    %277 = vector.extract_strided_slice %270 {offsets = [0, 32], sizes = [8, 32], strides = [1, 1]} : vector<8x128xf32> to vector<8x32xf32>
    %278 = arith.negf %277 : vector<8x32xf32>
    %279 = math.exp %278 : vector<8x32xf32>
    %cst_97 = arith.constant 1.000000e+00 : f32
    %280 = vector.broadcast %cst_97 : f32 to vector<8x32xf32>
    %281 = arith.addf %280, %279 : vector<8x32xf32>
    %282 = arith.divf %280, %281 : vector<8x32xf32>
    %283 = vector.extract_strided_slice %270 {offsets = [0, 64], sizes = [8, 32], strides = [1, 1]} : vector<8x128xf32> to vector<8x32xf32>
    %284 = math.tanh %283 : vector<8x32xf32>
    %285 = vector.extract_strided_slice %270 {offsets = [0, 96], sizes = [8, 32], strides = [1, 1]} : vector<8x128xf32> to vector<8x32xf32>
    %286 = arith.negf %285 : vector<8x32xf32>
    %287 = math.exp %286 : vector<8x32xf32>
    %cst_98 = arith.constant 1.000000e+00 : f32
    %288 = vector.broadcast %cst_98 : f32 to vector<8x32xf32>
    %289 = arith.addf %288, %287 : vector<8x32xf32>
    %290 = arith.divf %288, %289 : vector<8x32xf32>
    %291 = arith.mulf %282, %262 : vector<8x32xf32>
    %292 = arith.mulf %276, %284 : vector<8x32xf32>
    %293 = arith.addf %291, %292 : vector<8x32xf32>
    %294 = math.tanh %293 : vector<8x32xf32>
    %295 = arith.mulf %290, %294 : vector<8x32xf32>
    %c5_i32_99 = arith.constant 5 : i32
    %c2_i32_100 = arith.constant 2 : i32
    %296 = vector.broadcast %c5_i32_99 : i32 to vector<8x32xi32>
    %297 = vector.broadcast %c2_i32_100 : i32 to vector<8x32xi32>
    %298 = arith.select %25, %296, %297 : vector<8x32xi1>, vector<8x32xi32>
    %299 = arith.cmpi slt, %298, %3 : vector<8x32xi32>
    %cst_101 = arith.constant 0.000000e+00 : f32
    %300 = vector.broadcast %cst_101 : f32 to vector<8x32xf32>
    %301 = arith.select %299, %295, %300 : vector<8x32xi1>, vector<8x32xf32>
    %302 = vector.extract_strided_slice %301 {offsets = [0, 0], sizes = [8, 16], strides = [1, 1]} : vector<8x32xf32> to vector<8x16xf32>
    %303 = vector.shape_cast %302 : vector<8x16xf32> to vector<8x1x16xf32>
    %c0_102 = arith.constant 0 : index
    %c5_103 = arith.constant 5 : index
    %c0_104 = arith.constant 0 : index
    %304 = vector.load %arg3[%c0_102, %c5_103, %c0_104] : memref<8x8x32xf32, #tpu.memory_space<vmem>>, vector<8x1x16xf32>
    tpu.vector_store %arg3[%c0_102, %c5_103, %c0_104], %303 {strides = array<i32>} : memref<8x8x32xf32, #tpu.memory_space<vmem>>, vector<8x1x16xf32>,
    %305 = vector.extract_strided_slice %301 {offsets = [0, 16], sizes = [8, 16], strides = [1, 1]} : vector<8x32xf32> to vector<8x16xf32>
    %306 = vector.shape_cast %305 : vector<8x16xf32> to vector<8x1x16xf32>
    %c0_105 = arith.constant 0 : index
    %c2_106 = arith.constant 2 : index
    %c16_107 = arith.constant 16 : index
    %307 = vector.load %arg3[%c0_105, %c2_106, %c16_107] : memref<8x8x32xf32, #tpu.memory_space<vmem>>, vector<8x1x16xf32>
    tpu.vector_store %arg3[%c0_105, %c2_106, %c16_107], %306 {strides = array<i32>} : memref<8x8x32xf32, #tpu.memory_space<vmem>>, vector<8x1x16xf32>,
    %308 = arith.select %299, %295, %261 : vector<8x32xi1>, vector<8x32xf32>
    %309 = arith.select %299, %293, %262 : vector<8x32xi1>, vector<8x32xf32>
    %c6_108 = arith.constant 6 : index
    %c0_109 = arith.constant 0 : index
    %c0_110 = arith.constant 0 : index
    %310 = vector.load %arg0[%c6_108, %c0_109, %c0_110] : memref<8x8x128xf32, #tpu.memory_space<vmem>>, vector<1x8x128xf32>
    %311 = vector.shape_cast %310 : vector<1x8x128xf32> to vector<8x128xf32>
    %c1_111 = arith.constant 1 : index
    %c0_112 = arith.constant 0 : index
    %c0_113 = arith.constant 0 : index
    %312 = vector.load %arg0[%c1_111, %c0_112, %c0_113] : memref<8x8x128xf32, #tpu.memory_space<vmem>>, vector<1x8x128xf32>
    %313 = vector.shape_cast %312 : vector<1x8x128xf32> to vector<8x128xf32>
    %314 = arith.select %22, %311, %313 : vector<8x128xi1>, vector<8x128xf32>
    %315 = arith.truncf %308 : vector<8x32xf32> to vector<8x32xbf16>
    %cst_114 = arith.constant dense<0.000000e+00> : vector<8x128xf32>
    %316 = tpu.matmul %315, %0, %cst_114 {dimension_numbers = #tpu.dot_dimension_numbers<[1], [0], [0], [1], [0, 0, 1, 1], [], []>} : vector<8x32xbf16>, vector<32x128xbf16>, vector<8x128xf32> -> vector<8x128xf32>
    %317 = arith.addf %314, %316 : vector<8x128xf32>
    %318 = vector.extract_strided_slice %317 {offsets = [0, 0], sizes = [8, 32], strides = [1, 1]} : vector<8x128xf32> to vector<8x32xf32>
    %319 = arith.negf %318 : vector<8x32xf32>
    %320 = math.exp %319 : vector<8x32xf32>
    %cst_115 = arith.constant 1.000000e+00 : f32
    %321 = vector.broadcast %cst_115 : f32 to vector<8x32xf32>
    %322 = arith.addf %321, %320 : vector<8x32xf32>
    %323 = arith.divf %321, %322 : vector<8x32xf32>
    %324 = vector.extract_strided_slice %317 {offsets = [0, 32], sizes = [8, 32], strides = [1, 1]} : vector<8x128xf32> to vector<8x32xf32>
    %325 = arith.negf %324 : vector<8x32xf32>
    %326 = math.exp %325 : vector<8x32xf32>
    %cst_116 = arith.constant 1.000000e+00 : f32
    %327 = vector.broadcast %cst_116 : f32 to vector<8x32xf32>
    %328 = arith.addf %327, %326 : vector<8x32xf32>
    %329 = arith.divf %327, %328 : vector<8x32xf32>
    %330 = vector.extract_strided_slice %317 {offsets = [0, 64], sizes = [8, 32], strides = [1, 1]} : vector<8x128xf32> to vector<8x32xf32>
    %331 = math.tanh %330 : vector<8x32xf32>
    %332 = vector.extract_strided_slice %317 {offsets = [0, 96], sizes = [8, 32], strides = [1, 1]} : vector<8x128xf32> to vector<8x32xf32>
    %333 = arith.negf %332 : vector<8x32xf32>
    %334 = math.exp %333 : vector<8x32xf32>
    %cst_117 = arith.constant 1.000000e+00 : f32
    %335 = vector.broadcast %cst_117 : f32 to vector<8x32xf32>
    %336 = arith.addf %335, %334 : vector<8x32xf32>
    %337 = arith.divf %335, %336 : vector<8x32xf32>
    %338 = arith.mulf %329, %309 : vector<8x32xf32>
    %339 = arith.mulf %323, %331 : vector<8x32xf32>
    %340 = arith.addf %338, %339 : vector<8x32xf32>
    %341 = math.tanh %340 : vector<8x32xf32>
    %342 = arith.mulf %337, %341 : vector<8x32xf32>
    %c6_i32_118 = arith.constant 6 : i32
    %c1_i32_119 = arith.constant 1 : i32
    %343 = vector.broadcast %c6_i32_118 : i32 to vector<8x32xi32>
    %344 = vector.broadcast %c1_i32_119 : i32 to vector<8x32xi32>
    %345 = arith.select %25, %343, %344 : vector<8x32xi1>, vector<8x32xi32>
    %346 = arith.cmpi slt, %345, %3 : vector<8x32xi32>
    %cst_120 = arith.constant 0.000000e+00 : f32
    %347 = vector.broadcast %cst_120 : f32 to vector<8x32xf32>
    %348 = arith.select %346, %342, %347 : vector<8x32xi1>, vector<8x32xf32>
    %349 = vector.extract_strided_slice %348 {offsets = [0, 0], sizes = [8, 16], strides = [1, 1]} : vector<8x32xf32> to vector<8x16xf32>
    %350 = vector.shape_cast %349 : vector<8x16xf32> to vector<8x1x16xf32>
    %c0_121 = arith.constant 0 : index
    %c6_122 = arith.constant 6 : index
    %c0_123 = arith.constant 0 : index
    %351 = vector.load %arg3[%c0_121, %c6_122, %c0_123] : memref<8x8x32xf32, #tpu.memory_space<vmem>>, vector<8x1x16xf32>
    tpu.vector_store %arg3[%c0_121, %c6_122, %c0_123], %350 {strides = array<i32>} : memref<8x8x32xf32, #tpu.memory_space<vmem>>, vector<8x1x16xf32>,
    %352 = vector.extract_strided_slice %348 {offsets = [0, 16], sizes = [8, 16], strides = [1, 1]} : vector<8x32xf32> to vector<8x16xf32>
    %353 = vector.shape_cast %352 : vector<8x16xf32> to vector<8x1x16xf32>
    %c0_124 = arith.constant 0 : index
    %c1_125 = arith.constant 1 : index
    %c16_126 = arith.constant 16 : index
    %354 = vector.load %arg3[%c0_124, %c1_125, %c16_126] : memref<8x8x32xf32, #tpu.memory_space<vmem>>, vector<8x1x16xf32>
    tpu.vector_store %arg3[%c0_124, %c1_125, %c16_126], %353 {strides = array<i32>} : memref<8x8x32xf32, #tpu.memory_space<vmem>>, vector<8x1x16xf32>,
    %355 = arith.select %346, %342, %308 : vector<8x32xi1>, vector<8x32xf32>
    %356 = arith.select %346, %340, %309 : vector<8x32xi1>, vector<8x32xf32>
    %c7_127 = arith.constant 7 : index
    %c0_128 = arith.constant 0 : index
    %c0_129 = arith.constant 0 : index
    %357 = vector.load %arg0[%c7_127, %c0_128, %c0_129] : memref<8x8x128xf32, #tpu.memory_space<vmem>>, vector<1x8x128xf32>
    %358 = vector.shape_cast %357 : vector<1x8x128xf32> to vector<8x128xf32>
    %c0_130 = arith.constant 0 : index
    %c0_131 = arith.constant 0 : index
    %c0_132 = arith.constant 0 : index
    %359 = vector.load %arg0[%c0_130, %c0_131, %c0_132] : memref<8x8x128xf32, #tpu.memory_space<vmem>>, vector<1x8x128xf32>
    %360 = vector.shape_cast %359 : vector<1x8x128xf32> to vector<8x128xf32>
    %361 = arith.select %22, %358, %360 : vector<8x128xi1>, vector<8x128xf32>
    %362 = arith.truncf %355 : vector<8x32xf32> to vector<8x32xbf16>
    %cst_133 = arith.constant dense<0.000000e+00> : vector<8x128xf32>
    %363 = tpu.matmul %362, %0, %cst_133 {dimension_numbers = #tpu.dot_dimension_numbers<[1], [0], [0], [1], [0, 0, 1, 1], [], []>} : vector<8x32xbf16>, vector<32x128xbf16>, vector<8x128xf32> -> vector<8x128xf32>
    %364 = arith.addf %361, %363 : vector<8x128xf32>
    %365 = vector.extract_strided_slice %364 {offsets = [0, 0], sizes = [8, 32], strides = [1, 1]} : vector<8x128xf32> to vector<8x32xf32>
    %366 = arith.negf %365 : vector<8x32xf32>
    %367 = math.exp %366 : vector<8x32xf32>
    %cst_134 = arith.constant 1.000000e+00 : f32
    %368 = vector.broadcast %cst_134 : f32 to vector<8x32xf32>
    %369 = arith.addf %368, %367 : vector<8x32xf32>
    %370 = arith.divf %368, %369 : vector<8x32xf32>
    %371 = vector.extract_strided_slice %364 {offsets = [0, 32], sizes = [8, 32], strides = [1, 1]} : vector<8x128xf32> to vector<8x32xf32>
    %372 = arith.negf %371 : vector<8x32xf32>
    %373 = math.exp %372 : vector<8x32xf32>
    %cst_135 = arith.constant 1.000000e+00 : f32
    %374 = vector.broadcast %cst_135 : f32 to vector<8x32xf32>
    %375 = arith.addf %374, %373 : vector<8x32xf32>
    %376 = arith.divf %374, %375 : vector<8x32xf32>
    %377 = vector.extract_strided_slice %364 {offsets = [0, 64], sizes = [8, 32], strides = [1, 1]} : vector<8x128xf32> to vector<8x32xf32>
    %378 = math.tanh %377 : vector<8x32xf32>
    %379 = vector.extract_strided_slice %364 {offsets = [0, 96], sizes = [8, 32], strides = [1, 1]} : vector<8x128xf32> to vector<8x32xf32>
    %380 = arith.negf %379 : vector<8x32xf32>
    %381 = math.exp %380 : vector<8x32xf32>
    %cst_136 = arith.constant 1.000000e+00 : f32
    %382 = vector.broadcast %cst_136 : f32 to vector<8x32xf32>
    %383 = arith.addf %382, %381 : vector<8x32xf32>
    %384 = arith.divf %382, %383 : vector<8x32xf32>
    %385 = arith.mulf %376, %356 : vector<8x32xf32>
    %386 = arith.mulf %370, %378 : vector<8x32xf32>
    %387 = arith.addf %385, %386 : vector<8x32xf32>
    %388 = math.tanh %387 : vector<8x32xf32>
    %389 = arith.mulf %384, %388 : vector<8x32xf32>
    %c7_i32_137 = arith.constant 7 : i32
    %c0_i32_138 = arith.constant 0 : i32
    %390 = vector.broadcast %c7_i32_137 : i32 to vector<8x32xi32>
    %391 = vector.broadcast %c0_i32_138 : i32 to vector<8x32xi32>
    %392 = arith.select %25, %390, %391 : vector<8x32xi1>, vector<8x32xi32>
    %393 = arith.cmpi slt, %392, %3 : vector<8x32xi32>
    %cst_139 = arith.constant 0.000000e+00 : f32
    %394 = vector.broadcast %cst_139 : f32 to vector<8x32xf32>
    %395 = arith.select %393, %389, %394 : vector<8x32xi1>, vector<8x32xf32>
    %396 = vector.extract_strided_slice %395 {offsets = [0, 0], sizes = [8, 16], strides = [1, 1]} : vector<8x32xf32> to vector<8x16xf32>
    %397 = vector.shape_cast %396 : vector<8x16xf32> to vector<8x1x16xf32>
    %c0_140 = arith.constant 0 : index
    %c7_141 = arith.constant 7 : index
    %c0_142 = arith.constant 0 : index
    %398 = vector.load %arg3[%c0_140, %c7_141, %c0_142] : memref<8x8x32xf32, #tpu.memory_space<vmem>>, vector<8x1x16xf32>
    tpu.vector_store %arg3[%c0_140, %c7_141, %c0_142], %397 {strides = array<i32>} : memref<8x8x32xf32, #tpu.memory_space<vmem>>, vector<8x1x16xf32>,
    %399 = vector.extract_strided_slice %395 {offsets = [0, 16], sizes = [8, 16], strides = [1, 1]} : vector<8x32xf32> to vector<8x16xf32>
    %400 = vector.shape_cast %399 : vector<8x16xf32> to vector<8x1x16xf32>
    %c0_143 = arith.constant 0 : index
    %c0_144 = arith.constant 0 : index
    %c16_145 = arith.constant 16 : index
    %401 = vector.load %arg3[%c0_143, %c0_144, %c16_145] : memref<8x8x32xf32, #tpu.memory_space<vmem>>, vector<8x1x16xf32>
    tpu.vector_store %arg3[%c0_143, %c0_144, %c16_145], %400 {strides = array<i32>} : memref<8x8x32xf32, #tpu.memory_space<vmem>>, vector<8x1x16xf32>,
    %402 = arith.select %393, %389, %355 : vector<8x32xi1>, vector<8x32xf32>
    %c0_146 = arith.constant 0 : index
    %c0_147 = arith.constant 0 : index
    %403 = vector.load %arg4[%c0_146, %c0_147] : memref<8x32xf32, #tpu.memory_space<vmem>>, vector<8x32xf32>
    tpu.vector_store %arg4[%c0_146, %c0_147], %402 {strides = array<i32>} : memref<8x32xf32, #tpu.memory_space<vmem>>, vector<8x32xf32>,
    return
  }
}

</mosaic_0001>

<llo_original>
// kernel: sketch_encoder_forward.1
$region0: #{sketch_encoder_forward.1}
  #allocation0 [shape = 'u32[]', space=smem, size = 0x4, offset = 0x4, fixed_abs, tag = 'smem constant byte address 0x4 - core index']
  #allocation1 [shape = 'u32[72,128]{1,0:T(1,128)}', space=vmem, size = 0x9000, scoped, tag = 'internal scratch']
  %s0 = inlined_call_operand.vmem [shape: f32[8,8,128], index: 0, kind: input, shape index: {}]
  %s1 = inlined_call_operand.vmem [shape: s32[8,1], index: 1, kind: input, shape index: {}]
  %s2 = inlined_call_operand.vmem [shape: bf16[32,128], index: 2, kind: input, shape index: {}]
  %s3 = inlined_call_operand.vmem [shape: f32[8,8,32], index: 3, kind: output, shape index: {0}]
  %s4 = inlined_call_operand.vmem [shape: f32[8,32], index: 4, kind: output, shape index: {1}]
  %5 = xla_tuple %s3, %s4
  %s6 = sld [smem:[#allocation0]]
  $region30: #{sketch_encoder_forward.1} parent=0
    _
  %s8 = ssub.s32 1, %s6
  %s9 = scalar_select 0, %s8, %s6
  // Predicated region
  $region2: #{sketch_encoder_forward.1} parent=0 // pred_check
    _
  $region3: #{sketch_encoder_forward.1} parent=0 // pred_check_branch
    %11 = sbr.rel (0) target = $region5
  $region4: #{sketch_encoder_forward.1} parent=0 // pred_region
    _
  $region5: #{sketch_encoder_forward.1} parent=0 // pred_fallthru
    _
  // Predicated region
  $region6: #{sketch_encoder_forward.1} parent=0 // pred_check
    _
  $region7: #{sketch_encoder_forward.1} parent=0 // pred_check_branch
    %13 = sbr.rel (0) target = $region9
  $region8: #{sketch_encoder_forward.1} parent=0 // pred_region
    _
  $region9: #{sketch_encoder_forward.1} parent=0 // pred_fallthru
    _
  // Predicated region
  $region10: #{sketch_encoder_forward.1} parent=0 // pred_check
    _
  $region11: #{sketch_encoder_forward.1} parent=0 // pred_check_branch
    %15 = sbr.rel (0) target = $region13
  $region12: #{sketch_encoder_forward.1} parent=0 // pred_region
    _
  $region13: #{sketch_encoder_forward.1} parent=0 // pred_fallthru
    _
  %v17 = vld [vmem:[%s2] sm:$0xf]
  %v18 = vld [vmem:[%s2 + $0x4] sm:$0xf]
  %v19 = vld [vmem:[%s2 + $0x8] sm:$0xf]
  %v20 = vld [vmem:[%s2 + $0xc] sm:$0xf]
  %v21 = vld [vmem:[%s1] sm:$0xff]
  %22 = vset.pattern.permute.xlu0 0
  %23 = vperm.xlu0 %22, %v21
  %v24 = vpop.permute.xlu0 %23
  %v25 = vlaneseq
  %v26 = vand.u32 %v25, 127
  %vm27 = vcmp.lt.s32.totalorder %v26, 0
  %v28 = vsub.s32 0, %v26
  %v29 = vsel %vm27, %v28, %v26
  %v30 = vshrl.u32 %v29, 5
  %v31 = vand.u32 %v29, 31
  %v32 = vsub.s32 0, %v31
  %v33 = vsel %vm27, %v32, %v31
  %vm34 = vcmp.ne.s32.totalorder %v33, 0
  %vm35 = vcmp.lt.s32.totalorder %v33, 0
  %vm36 = vmand %vm35, %vm34
  %v37 = vadd.s32 %v33, 32
  %v38 = vsel %vm36, %v37, %v33
  %vm39 = vcmp.lt.s32.totalorder %v38, 16
  %vm40 = vcmp.lt.s32.totalorder %v26, 16
  %v41 = vld [vmem:[%s0] sm:$0xff]
  %s42 = scalar_lea.vmem %s0, 56
  %v43 = vld [vmem:[%s42] sm:$0xff]
  %v44 = vsel %vm39, %v41, %v43
  %v49 = vunpack.c.l.b16 %v17
  %v50 = vunpack.c.l.b16 %v18
  %v51 = vunpack.c.l.b16 %v19
  %v52 = vunpack.c.l.b16 %v20
  %v53 = vpack.c.b16 %v50, %v49
  %v54 = vpack.c.b16 %v52, %v51
  %vm57 = vcmask 261120
  %v59 = vsel %vm57, 0, 0
  %61 = vmatpush.bf16.msra.mxu0 0
  %62 = vmatpush.bf16.msra.mxu0 0
  %63 = vmatpush.bf16.msra.mxu0 0
  %64 = vmatpush.bf16.msra.mxu0 0
  %65 = vmatpush.bf16.msra.mxu0 0
  %66 = vmatpush.bf16.msra.mxu0 0
  %67 = vmatpush.bf16.msra.mxu0 %v54
  %68 = vmatpush.bf16.msra.mxu0 %v53
  %69 = vmatmul.bf16.gmra.mxu0 %v59
  %v70 = vpop.f32.mrf.mxu0
  %v71 = vadd.f32 0.0, %v70
  %v72 = vpop.f32.mrf.mxu0
  %73 = vdwg.mxu0
  %v74 = vadd.f32 %v44, %v71
  %v75 = vxor.u32 %v74, 2147483648
  %v76 = vmul.f32 %v75, 1.442695
  %v77 = vpow.pop %v76
  %v78 = vadd.f32 %v77, 1.0
  %v79 = vrcp.pop %v78
  %v80 = vmul.f32 %v78, %v79
  %v81 = vsub.f32 1.0, %v80
  %v82 = vmul.f32 %v79, %v81
  %v83 = vadd.f32 %v79, %v82
  %vm84 = vweird.f32 %v78
  %vm85 = vweird.f32 %v79
  %vm86 = vmor %vm84, %vm85
  %v87 = vsel %vm86, %v79, %v83
  %v88 = vand.u32 2147483647, %v78
  %vm89 = vcmp.eq.f32.partialorder %v88, 8.507059e+37
  %v90 = vand.u32 %v78, 2147483648
  %v91 = vor.u32 1.1754944e-38, %v90
  %v92 = vsel %vm89, %v91, %v87
  %v93 = vmul.f32 1.0, %v92
  %v94 = vtanh.pop %v74
  %v95 = vmul.f32 %v93, 0.0
  %97 = vrot.lane.b32.xlu0 %v94, 64
  %v98 = vpop.permute.xlu0 %97
  %v100 = vmul.f32 %v93, %v98
  %102 = vrot.lane.b32.xlu0 %v100, 32
  %v103 = vpop.permute.xlu0 %102
  %v105 = vadd.f32 %v95, %v103
  %v106 = vtanh.pop %v105
  %108 = vrot.lane.b32.xlu0 %v106, 64
  %v109 = vpop.permute.xlu0 %108
  %v111 = vmul.f32 %v93, %v109
  %v112 = vsel %vm40, 0, 7
  %vm113 = vcmp.lt.s32.totalorder %v112, %v24
  %115 = vrot.lane.b32.xlu0 %v111, 32
  %v116 = vpop.permute.xlu0 %115
  %v118 = vsel %vm113, %v116, 0.0
  %v120 = vrot.slane %v118, 1
  %v121 = vrot.slane %v118, 2
  %v122 = vrot.slane %v118, 3
  %v123 = vrot.slane %v118, 4
  %v124 = vrot.slane %v118, 5
  %v125 = vrot.slane %v118, 6
  %v126 = vrot.slane %v118, 7
  %vm134 = vcmask 122880
  %135 = vst.msk [vmem:[%s3] sm:$0x1] %vm134, %v118
  %136 = vst.msk [vmem:[%s3 + $0x8] sm:$0x1] %vm134, %v120
  %137 = vst.msk [vmem:[%s3 + $0x10] sm:$0x1] %vm134, %v121
  %138 = vst.msk [vmem:[%s3 + $0x18] sm:$0x1] %vm134, %v122
  %139 = vst.msk [vmem:[%s3 + $0x20] sm:$0x1] %vm134, %v123
  %140 = vst.msk [vmem:[%s3 + $0x28] sm:$0x1] %vm134, %v124
  %141 = vst.msk [vmem:[%s3 + $0x30] sm:$0x1] %vm134, %v125
  %142 = vst.msk [vmem:[%s3 + $0x38] sm:$0x1] %vm134, %v126
  %vm143 = vcmask 254080
  %144 = vst.msk [vmem:[%s3 + $0x7] sm:$0x1] %vm143, %v118
  %145 = vst.msk [vmem:[%s3 + $0xf] sm:$0x1] %vm143, %v120
  %146 = vst.msk [vmem:[%s3 + $0x17] sm:$0x1] %vm143, %v121
  %147 = vst.msk [vmem:[%s3 + $0x1f] sm:$0x1] %vm143, %v122
  %148 = vst.msk [vmem:[%s3 + $0x27] sm:$0x1] %vm143, %v123
  %149 = vst.msk [vmem:[%s3 + $0x2f] sm:$0x1] %vm143, %v124
  %150 = vst.msk [vmem:[%s3 + $0x37] sm:$0x1] %vm143, %v125
  %151 = vst.msk [vmem:[%s3 + $0x3f] sm:$0x1] %vm143, %v126
  %153 = vrot.lane.b32.xlu0 %v105, 96
  %v154 = vpop.permute.xlu0 %153
  %v156 = vsel %vm113, %v154, 0.0
  %s157 = scalar_lea.vmem %s0, 8
  %v158 = vld [vmem:[%s157] sm:$0xff]
  %s159 = scalar_lea.vmem %s0, 48
  %v160 = vld [vmem:[%s159] sm:$0xff]
  %v161 = vsel %vm39, %v158, %v160
  %v162 = vpack.c.bf16 %v118, %v118
  %v164 = vsel %vm57, %v162, 0
  %166 = vmatpush.bf16.msra.mxu0 0
  %167 = vmatpush.bf16.msra.mxu0 0
  %168 = vmatpush.bf16.msra.mxu0 0
  %169 = vmatpush.bf16.msra.mxu0 0
  %170 = vmatpush.bf16.msra.mxu0 0
  %171 = vmatpush.bf16.msra.mxu0 0
  %172 = vmatpush.bf16.msra.mxu0 %v54
  %173 = vmatpush.bf16.msra.mxu0 %v53
  %174 = vmatmul.bf16.gmra.mxu0 %v164
  %v175 = vpop.f32.mrf.mxu0
  %v176 = vadd.f32 0.0, %v175
  %v177 = vpop.f32.mrf.mxu0
  %178 = vdwg.mxu0
  %v179 = vadd.f32 %v161, %v176
  %v180 = vxor.u32 %v179, 2147483648
  %v181 = vmul.f32 %v180, 1.442695
  %v182 = vpow.pop %v181
  %v183 = vadd.f32 %v182, 1.0
  %v184 = vrcp.pop %v183
  %v185 = vmul.f32 %v183, %v184
  %v186 = vsub.f32 1.0, %v185
  %v187 = vmul.f32 %v184, %v186
  %v188 = vadd.f32 %v184, %v187
  %vm189 = vweird.f32 %v183
  %vm190 = vweird.f32 %v184
  %vm191 = vmor %vm189, %vm190
  %v192 = vsel %vm191, %v184, %v188
  %v193 = vand.u32 2147483647, %v183
  %vm194 = vcmp.eq.f32.partialorder %v193, 8.507059e+37
  %v195 = vand.u32 %v183, 2147483648
  %v196 = vor.u32 1.1754944e-38, %v195
  %v197 = vsel %vm194, %v196, %v192
  %v198 = vmul.f32 1.0, %v197
  %v199 = vtanh.pop %v179
  %201 = vrot.lane.b32.xlu0 %v156, 32
  %v202 = vpop.permute.xlu0 %201
  %v204 = vmul.f32 %v198, %v202
  %206 = vrot.lane.b32.xlu0 %v199, 64
  %v207 = vpop.permute.xlu0 %206
  %v209 = vmul.f32 %v198, %v207
  %211 = vrot.lane.b32.xlu0 %v209, 32
  %v212 = vpop.permute.xlu0 %211
  %v214 = vadd.f32 %v204, %v212
  %v215 = vtanh.pop %v214
  %217 = vrot.lane.b32.xlu0 %v215, 64
  %v218 = vpop.permute.xlu0 %217
  %v220 = vmul.f32 %v198, %v218
  %v221 = vsel %vm40, 1, 6
  %vm222 = vcmp.lt.s32.totalorder %v221, %v24
  %224 = vrot.lane.b32.xlu0 %v220, 32
  %v225 = vpop.permute.xlu0 %224
  %v227 = vsel %vm222, %v225, 0.0
  %v229 = vrot.slane %v227, 1
  %v230 = vrot.slane %v227, 2
  %v231 = vrot.slane %v227, 3
  %v232 = vrot.slane %v227, 4
  %v233 = vrot.slane %v227, 5
  %v234 = vrot.slane %v227, 6
  %v235 = vrot.slane %v227, 7
  %243 = vst.msk [vmem:[%s3 + $0x1] sm:$0x1] %vm134, %v227
  %244 = vst.msk [vmem:[%s3 + $0x9] sm:$0x1] %vm134, %v229
  %245 = vst.msk [vmem:[%s3 + $0x11] sm:$0x1] %vm134, %v230
  %246 = vst.msk [vmem:[%s3 + $0x19] sm:$0x1] %vm134, %v231
  %247 = vst.msk [vmem:[%s3 + $0x21] sm:$0x1] %vm134, %v232
  %248 = vst.msk [vmem:[%s3 + $0x29] sm:$0x1] %vm134, %v233
  %249 = vst.msk [vmem:[%s3 + $0x31] sm:$0x1] %vm134, %v234
  %250 = vst.msk [vmem:[%s3 + $0x39] sm:$0x1] %vm134, %v235
  %251 = vst.msk [vmem:[%s3 + $0x6] sm:$0x1] %vm143, %v227
  %252 = vst.msk [vmem:[%s3 + $0xe] sm:$0x1] %vm143, %v229
  %253 = vst.msk [vmem:[%s3 + $0x16] sm:$0x1] %vm143, %v230
  %254 = vst.msk [vmem:[%s3 + $0x1e] sm:$0x1] %vm143, %v231
  %255 = vst.msk [vmem:[%s3 + $0x26] sm:$0x1] %vm143, %v232
  %256 = vst.msk [vmem:[%s3 + $0x2e] sm:$0x1] %vm143, %v233
  %257 = vst.msk [vmem:[%s3 + $0x36] sm:$0x1] %vm143, %v234
  %258 = vst.msk [vmem:[%s3 + $0x3e] sm:$0x1] %vm143, %v235
  %v259 = vsel %vm222, %v225, %v118
  %261 = vrot.lane.b32.xlu0 %v214, 96
  %v262 = vpop.permute.xlu0 %261
  %v264 = vsel %vm222, %v262, %v156
  %s265 = scalar_lea.vmem %s0, 16
  %v266 = vld [vmem:[%s265] sm:$0xff]
  %s267 = scalar_lea.vmem %s0, 40
  %v268 = vld [vmem:[%s267] sm:$0xff]
  %v269 = vsel %vm39, %v266, %v268
  %v270 = vpack.c.bf16 %v259, %v259
  %v272 = vsel %vm57, %v270, 0
  %274 = vmatpush.bf16.msra.mxu0 0
  %275 = vmatpush.bf16.msra.mxu0 0
  %276 = vmatpush.bf16.msra.mxu0 0
  %277 = vmatpush.bf16.msra.mxu0 0
  %278 = vmatpush.bf16.msra.mxu0 0
  %279 = vmatpush.bf16.msra.mxu0 0
  %280 = vmatpush.bf16.msra.mxu0 %v54
  %281 = vmatpush.bf16.msra.mxu0 %v53
  %282 = vmatmul.bf16.gmra.mxu0 %v272
  %v283 = vpop.f32.mrf.mxu0
  %v284 = vadd.f32 0.0, %v283
  %v285 = vpop.f32.mrf.mxu0
  %286 = vdwg.mxu0
  %v287 = vadd.f32 %v269, %v284
  %v288 = vxor.u32 %v287, 2147483648
  %v289 = vmul.f32 %v288, 1.442695
  %v290 = vpow.pop %v289
  %v291 = vadd.f32 %v290, 1.0
  %v292 = vrcp.pop %v291
  %v293 = vmul.f32 %v291, %v292
  %v294 = vsub.f32 1.0, %v293
  %v295 = vmul.f32 %v292, %v294
  %v296 = vadd.f32 %v292, %v295
  %vm297 = vweird.f32 %v291
  %vm298 = vweird.f32 %v292
  %vm299 = vmor %vm297, %vm298
  %v300 = vsel %vm299, %v292, %v296
  %v301 = vand.u32 2147483647, %v291
  %vm302 = vcmp.eq.f32.partialorder %v301, 8.507059e+37
  %v303 = vand.u32 %v291, 2147483648
  %v304 = vor.u32 1.1754944e-38, %v303
  %v305 = vsel %vm302, %v304, %v300
  %v306 = vmul.f32 1.0, %v305
  %v307 = vtanh.pop %v287
  %309 = vrot.lane.b32.xlu0 %v264, 32
  %v310 = vpop.permute.xlu0 %309
  %v312 = vmul.f32 %v306, %v310
  %314 = vrot.lane.b32.xlu0 %v307, 64
  %v315 = vpop.permute.xlu0 %314
  %v317 = vmul.f32 %v306, %v315
  %319 = vrot.lane.b32.xlu0 %v317, 32
  %v320 = vpop.permute.xlu0 %319
  %v322 = vadd.f32 %v312, %v320
  %v323 = vtanh.pop %v322
  %325 = vrot.lane.b32.xlu0 %v323, 64
  %v326 = vpop.permute.xlu0 %325
  %v328 = vmul.f32 %v306, %v326
  %v329 = vsel %vm40, 2, 5
  %vm330 = vcmp.lt.s32.totalorder %v329, %v24
  %332 = vrot.lane.b32.xlu0 %v328, 32
  %v333 = vpop.permute.xlu0 %332
  %v335 = vsel %vm330, %v333, 0.0
  %v337 = vrot.slane %v335, 1
  %v338 = vrot.slane %v335, 2
  %v339 = vrot.slane %v335, 3
  %v340 = vrot.slane %v335, 4
  %v341 = vrot.slane %v335, 5
  %v342 = vrot.slane %v335, 6
  %v343 = vrot.slane %v335, 7
  %351 = vst.msk [vmem:[%s3 + $0x2] sm:$0x1] %vm134, %v335
  %352 = vst.msk [vmem:[%s3 + $0xa] sm:$0x1] %vm134, %v337
  %353 = vst.msk [vmem:[%s3 + $0x12] sm:$0x1] %vm134, %v338
  %354 = vst.msk [vmem:[%s3 + $0x1a] sm:$0x1] %vm134, %v339
  %355 = vst.msk [vmem:[%s3 + $0x22] sm:$0x1] %vm134, %v340
  %356 = vst.msk [vmem:[%s3 + $0x2a] sm:$0x1] %vm134, %v341
  %357 = vst.msk [vmem:[%s3 + $0x32] sm:$0x1] %vm134, %v342
  %358 = vst.msk [vmem:[%s3 + $0x3a] sm:$0x1] %vm134, %v343
  %359 = vst.msk [vmem:[%s3 + $0x5] sm:$0x1] %vm143, %v335
  %360 = vst.msk [vmem:[%s3 + $0xd] sm:$0x1] %vm143, %v337
  %361 = vst.msk [vmem:[%s3 + $0x15] sm:$0x1] %vm143, %v338
  %362 = vst.msk [vmem:[%s3 + $0x1d] sm:$0x1] %vm143, %v339
  %363 = vst.msk [vmem:[%s3 + $0x25] sm:$0x1] %vm143, %v340
  %364 = vst.msk [vmem:[%s3 + $0x2d] sm:$0x1] %vm143, %v341
  %365 = vst.msk [vmem:[%s3 + $0x35] sm:$0x1] %vm143, %v342
  %366 = vst.msk [vmem:[%s3 + $0x3d] sm:$0x1] %vm143, %v343
  %v367 = vsel %vm330, %v333, %v259
  %369 = vrot.lane.b32.xlu0 %v322, 96
  %v370 = vpop.permute.xlu0 %369
  %v372 = vsel %vm330, %v370, %v264
  %s373 = scalar_lea.vmem %s0, 24
  %v374 = vld [vmem:[%s373] sm:$0xff]
  %s375 = scalar_lea.vmem %s0, 32
  %v376 = vld [vmem:[%s375] sm:$0xff]
  %v377 = vsel %vm39, %v374, %v376
  %v378 = vpack.c.bf16 %v367, %v367
  %v380 = vsel %vm57, %v378, 0
  %382 = vmatpush.bf16.msra.mxu0 0
  %383 = vmatpush.bf16.msra.mxu0 0
  %384 = vmatpush.bf16.msra.mxu0 0
  %385 = vmatpush.bf16.msra.mxu0 0
  %386 = vmatpush.bf16.msra.mxu0 0
  %387 = vmatpush.bf16.msra.mxu0 0
  %388 = vmatpush.bf16.msra.mxu0 %v54
  %389 = vmatpush.bf16.msra.mxu0 %v53
  %390 = vmatmul.bf16.gmra.mxu0 %v380
  %v391 = vpop.f32.mrf.mxu0
  %v392 = vadd.f32 0.0, %v391
  %v393 = vpop.f32.mrf.mxu0
  %394 = vdwg.mxu0
  %v395 = vadd.f32 %v377, %v392
  %v396 = vxor.u32 %v395, 2147483648
  %v397 = vmul.f32 %v396, 1.442695
  %v398 = vpow.pop %v397
  %v399 = vadd.f32 %v398, 1.0
  %v400 = vrcp.pop %v399
  %v401 = vmul.f32 %v399, %v400
  %v402 = vsub.f32 1.0, %v401
  %v403 = vmul.f32 %v400, %v402
  %v404 = vadd.f32 %v400, %v403
  %vm405 = vweird.f32 %v399
  %vm406 = vweird.f32 %v400
  %vm407 = vmor %vm405, %vm406
  %v408 = vsel %vm407, %v400, %v404
  %v409 = vand.u32 2147483647, %v399
  %vm410 = vcmp.eq.f32.partialorder %v409, 8.507059e+37
  %v411 = vand.u32 %v399, 2147483648
  %v412 = vor.u32 1.1754944e-38, %v411
  %v413 = vsel %vm410, %v412, %v408
  %v414 = vmul.f32 1.0, %v413
  %v415 = vtanh.pop %v395
  %417 = vrot.lane.b32.xlu0 %v372, 32
  %v418 = vpop.permute.xlu0 %417
  %v420 = vmul.f32 %v414, %v418
  %422 = vrot.lane.b32.xlu0 %v415, 64
  %v423 = vpop.permute.xlu0 %422
  %v425 = vmul.f32 %v414, %v423
  %427 = vrot.lane.b32.xlu0 %v425, 32
  %v428 = vpop.permute.xlu0 %427
  %v430 = vadd.f32 %v420, %v428
  %v431 = vtanh.pop %v430
  %433 = vrot.lane.b32.xlu0 %v431, 64
  %v434 = vpop.permute.xlu0 %433
  %v436 = vmul.f32 %v414, %v434
  %v437 = vsel %vm40, 3, 4
  %vm438 = vcmp.lt.s32.totalorder %v437, %v24
  %440 = vrot.lane.b32.xlu0 %v436, 32
  %v441 = vpop.permute.xlu0 %440
  %v443 = vsel %vm438, %v441, 0.0
  %v445 = vrot.slane %v443, 1
  %v446 = vrot.slane %v443, 2
  %v447 = vrot.slane %v443, 3
  %v448 = vrot.slane %v443, 4
  %v449 = vrot.slane %v443, 5
  %v450 = vrot.slane %v443, 6
  %v451 = vrot.slane %v443, 7
  %459 = vst.msk [vmem:[%s3 + $0x3] sm:$0x1] %vm134, %v443
  %460 = vst.msk [vmem:[%s3 + $0xb] sm:$0x1] %vm134, %v445
  %461 = vst.msk [vmem:[%s3 + $0x13] sm:$0x1] %vm134, %v446
  %462 = vst.msk [vmem:[%s3 + $0x1b] sm:$0x1] %vm134, %v447
  %463 = vst.msk [vmem:[%s3 + $0x23] sm:$0x1] %vm134, %v448
  %464 = vst.msk [vmem:[%s3 + $0x2b] sm:$0x1] %vm134, %v449
  %465 = vst.msk [vmem:[%s3 + $0x33] sm:$0x1] %vm134, %v450
  %466 = vst.msk [vmem:[%s3 + $0x3b] sm:$0x1] %vm134, %v451
  %467 = vst.msk [vmem:[%s3 + $0x4] sm:$0x1] %vm143, %v443
  %468 = vst.msk [vmem:[%s3 + $0xc] sm:$0x1] %vm143, %v445
  %469 = vst.msk [vmem:[%s3 + $0x14] sm:$0x1] %vm143, %v446
  %470 = vst.msk [vmem:[%s3 + $0x1c] sm:$0x1] %vm143, %v447
  %471 = vst.msk [vmem:[%s3 + $0x24] sm:$0x1] %vm143, %v448
  %472 = vst.msk [vmem:[%s3 + $0x2c] sm:$0x1] %vm143, %v449
  %473 = vst.msk [vmem:[%s3 + $0x34] sm:$0x1] %vm143, %v450
  %474 = vst.msk [vmem:[%s3 + $0x3c] sm:$0x1] %vm143, %v451
  %v475 = vsel %vm438, %v441, %v367
  %477 = vrot.lane.b32.xlu0 %v430, 96
  %v478 = vpop.permute.xlu0 %477
  %v480 = vsel %vm438, %v478, %v372
  %v481 = vld [vmem:[%s375] sm:$0xff]
  %v482 = vld [vmem:[%s373] sm:$0xff]
  %v483 = vsel %vm39, %v481, %v482
  %v484 = vpack.c.bf16 %v475, %v475
  %v486 = vsel %vm57, %v484, 0
  %488 = vmatpush.bf16.msra.mxu0 0
  %489 = vmatpush.bf16.msra.mxu0 0
  %490 = vmatpush.bf16.msra.mxu0 0
  %491 = vmatpush.bf16.msra.mxu0 0
  %492 = vmatpush.bf16.msra.mxu0 0
  %493 = vmatpush.bf16.msra.mxu0 0
  %494 = vmatpush.bf16.msra.mxu0 %v54
  %495 = vmatpush.bf16.msra.mxu0 %v53
  %496 = vmatmul.bf16.gmra.mxu0 %v486
  %v497 = vpop.f32.mrf.mxu0
  %v498 = vadd.f32 0.0, %v497
  %v499 = vpop.f32.mrf.mxu0
  %500 = vdwg.mxu0
  %v501 = vadd.f32 %v483, %v498
  %v502 = vxor.u32 %v501, 2147483648
  %v503 = vmul.f32 %v502, 1.442695
  %v504 = vpow.pop %v503
  %v505 = vadd.f32 %v504, 1.0
  %v506 = vrcp.pop %v505
  %v507 = vmul.f32 %v505, %v506
  %v508 = vsub.f32 1.0, %v507
  %v509 = vmul.f32 %v506, %v508
  %v510 = vadd.f32 %v506, %v509
  %vm511 = vweird.f32 %v505
  %vm512 = vweird.f32 %v506
  %vm513 = vmor %vm511, %vm512
  %v514 = vsel %vm513, %v506, %v510
  %v515 = vand.u32 2147483647, %v505
  %vm516 = vcmp.eq.f32.partialorder %v515, 8.507059e+37
  %v517 = vand.u32 %v505, 2147483648
  %v518 = vor.u32 1.1754944e-38, %v517
  %v519 = vsel %vm516, %v518, %v514
  %v520 = vmul.f32 1.0, %v519
  %v521 = vtanh.pop %v501
  %523 = vrot.lane.b32.xlu0 %v480, 32
  %v524 = vpop.permute.xlu0 %523
  %v526 = vmul.f32 %v520, %v524
  %528 = vrot.lane.b32.xlu0 %v521, 64
  %v529 = vpop.permute.xlu0 %528
  %v531 = vmul.f32 %v520, %v529
  %533 = vrot.lane.b32.xlu0 %v531, 32
  %v534 = vpop.permute.xlu0 %533
  %v536 = vadd.f32 %v526, %v534
  %v537 = vtanh.pop %v536
  %539 = vrot.lane.b32.xlu0 %v537, 64
  %v540 = vpop.permute.xlu0 %539
  %v542 = vmul.f32 %v520, %v540
  %v543 = vsel %vm40, 4, 3
  %vm544 = vcmp.lt.s32.totalorder %v543, %v24
  %546 = vrot.lane.b32.xlu0 %v542, 32
  %v547 = vpop.permute.xlu0 %546
  %v549 = vsel %vm544, %v547, 0.0
  %v551 = vrot.slane %v549, 1
  %v552 = vrot.slane %v549, 2
  %v553 = vrot.slane %v549, 3
  %v554 = vrot.slane %v549, 4
  %v555 = vrot.slane %v549, 5
  %v556 = vrot.slane %v549, 6
  %v557 = vrot.slane %v549, 7
  %565 = vst.msk [vmem:[%s3 + $0x4] sm:$0x1] %vm134, %v549
  %566 = vst.msk [vmem:[%s3 + $0xc] sm:$0x1] %vm134, %v551
  %567 = vst.msk [vmem:[%s3 + $0x14] sm:$0x1] %vm134, %v552
  %568 = vst.msk [vmem:[%s3 + $0x1c] sm:$0x1] %vm134, %v553
  %569 = vst.msk [vmem:[%s3 + $0x24] sm:$0x1] %vm134, %v554
  %570 = vst.msk [vmem:[%s3 + $0x2c] sm:$0x1] %vm134, %v555
  %571 = vst.msk [vmem:[%s3 + $0x34] sm:$0x1] %vm134, %v556
  %572 = vst.msk [vmem:[%s3 + $0x3c] sm:$0x1] %vm134, %v557
  %573 = vst.msk [vmem:[%s3 + $0x3] sm:$0x1] %vm143, %v549
  %574 = vst.msk [vmem:[%s3 + $0xb] sm:$0x1] %vm143, %v551
  %575 = vst.msk [vmem:[%s3 + $0x13] sm:$0x1] %vm143, %v552
  %576 = vst.msk [vmem:[%s3 + $0x1b] sm:$0x1] %vm143, %v553
  %577 = vst.msk [vmem:[%s3 + $0x23] sm:$0x1] %vm143, %v554
  %578 = vst.msk [vmem:[%s3 + $0x2b] sm:$0x1] %vm143, %v555
  %579 = vst.msk [vmem:[%s3 + $0x33] sm:$0x1] %vm143, %v556
  %580 = vst.msk [vmem:[%s3 + $0x3b] sm:$0x1] %vm143, %v557
  %v581 = vsel %vm544, %v547, %v475
  %583 = vrot.lane.b32.xlu0 %v536, 96
  %v584 = vpop.permute.xlu0 %583
  %v586 = vsel %vm544, %v584, %v480
  %v587 = vld [vmem:[%s267] sm:$0xff]
  %v588 = vld [vmem:[%s265] sm:$0xff]
  %v589 = vsel %vm39, %v587, %v588
  %v590 = vpack.c.bf16 %v581, %v581
  %v592 = vsel %vm57, %v590, 0
  %594 = vmatpush.bf16.msra.mxu0 0
  %595 = vmatpush.bf16.msra.mxu0 0
  %596 = vmatpush.bf16.msra.mxu0 0
  %597 = vmatpush.bf16.msra.mxu0 0
  %598 = vmatpush.bf16.msra.mxu0 0
  %599 = vmatpush.bf16.msra.mxu0 0
  %600 = vmatpush.bf16.msra.mxu0 %v54
  %601 = vmatpush.bf16.msra.mxu0 %v53
  %602 = vmatmul.bf16.gmra.mxu0 %v592
  %v603 = vpop.f32.mrf.mxu0
  %v604 = vadd.f32 0.0, %v603
  %v605 = vpop.f32.mrf.mxu0
  %606 = vdwg.mxu0
  %v607 = vadd.f32 %v589, %v604
  %v608 = vxor.u32 %v607, 2147483648
  %v609 = vmul.f32 %v608, 1.442695
  %v610 = vpow.pop %v609
  %v611 = vadd.f32 %v610, 1.0
  %v612 = vrcp.pop %v611
  %v613 = vmul.f32 %v611, %v612
  %v614 = vsub.f32 1.0, %v613
  %v615 = vmul.f32 %v612, %v614
  %v616 = vadd.f32 %v612, %v615
  %vm617 = vweird.f32 %v611
  %vm618 = vweird.f32 %v612
  %vm619 = vmor %vm617, %vm618
  %v620 = vsel %vm619, %v612, %v616
  %v621 = vand.u32 2147483647, %v611
  %vm622 = vcmp.eq.f32.partialorder %v621, 8.507059e+37
  %v623 = vand.u32 %v611, 2147483648
  %v624 = vor.u32 1.1754944e-38, %v623
  %v625 = vsel %vm622, %v624, %v620
  %v626 = vmul.f32 1.0, %v625
  %v627 = vtanh.pop %v607
  %629 = vrot.lane.b32.xlu0 %v586, 32
  %v630 = vpop.permute.xlu0 %629
  %v632 = vmul.f32 %v626, %v630
  %634 = vrot.lane.b32.xlu0 %v627, 64
  %v635 = vpop.permute.xlu0 %634
  %v637 = vmul.f32 %v626, %v635
  %639 = vrot.lane.b32.xlu0 %v637, 32
  %v640 = vpop.permute.xlu0 %639
  %v642 = vadd.f32 %v632, %v640
  %v643 = vtanh.pop %v642
  %645 = vrot.lane.b32.xlu0 %v643, 64
  %v646 = vpop.permute.xlu0 %645
  %v648 = vmul.f32 %v626, %v646
  %v649 = vsel %vm40, 5, 2
  %vm650 = vcmp.lt.s32.totalorder %v649, %v24
  %652 = vrot.lane.b32.xlu0 %v648, 32
  %v653 = vpop.permute.xlu0 %652
  %v655 = vsel %vm650, %v653, 0.0
  %v657 = vrot.slane %v655, 1
  %v658 = vrot.slane %v655, 2
  %v659 = vrot.slane %v655, 3
  %v660 = vrot.slane %v655, 4
  %v661 = vrot.slane %v655, 5
  %v662 = vrot.slane %v655, 6
  %v663 = vrot.slane %v655, 7
  %671 = vst.msk [vmem:[%s3 + $0x5] sm:$0x1] %vm134, %v655
  %672 = vst.msk [vmem:[%s3 + $0xd] sm:$0x1] %vm134, %v657
  %673 = vst.msk [vmem:[%s3 + $0x15] sm:$0x1] %vm134, %v658
  %674 = vst.msk [vmem:[%s3 + $0x1d] sm:$0x1] %vm134, %v659
  %675 = vst.msk [vmem:[%s3 + $0x25] sm:$0x1] %vm134, %v660
  %676 = vst.msk [vmem:[%s3 + $0x2d] sm:$0x1] %vm134, %v661
  %677 = vst.msk [vmem:[%s3 + $0x35] sm:$0x1] %vm134, %v662
  %678 = vst.msk [vmem:[%s3 + $0x3d] sm:$0x1] %vm134, %v663
  %679 = vst.msk [vmem:[%s3 + $0x2] sm:$0x1] %vm143, %v655
  %680 = vst.msk [vmem:[%s3 + $0xa] sm:$0x1] %vm143, %v657
  %681 = vst.msk [vmem:[%s3 + $0x12] sm:$0x1] %vm143, %v658
  %682 = vst.msk [vmem:[%s3 + $0x1a] sm:$0x1] %vm143, %v659
  %683 = vst.msk [vmem:[%s3 + $0x22] sm:$0x1] %vm143, %v660
  %684 = vst.msk [vmem:[%s3 + $0x2a] sm:$0x1] %vm143, %v661
  %685 = vst.msk [vmem:[%s3 + $0x32] sm:$0x1] %vm143, %v662
  %686 = vst.msk [vmem:[%s3 + $0x3a] sm:$0x1] %vm143, %v663
  %v687 = vsel %vm650, %v653, %v581
  %689 = vrot.lane.b32.xlu0 %v642, 96
  %v690 = vpop.permute.xlu0 %689
  %v692 = vsel %vm650, %v690, %v586
  %v693 = vld [vmem:[%s159] sm:$0xff]
  %v694 = vld [vmem:[%s157] sm:$0xff]
  %v695 = vsel %vm39, %v693, %v694
  %v696 = vpack.c.bf16 %v687, %v687
  %v698 = vsel %vm57, %v696, 0
  %700 = vmatpush.bf16.msra.mxu0 0
  %701 = vmatpush.bf16.msra.mxu0 0
  %702 = vmatpush.bf16.msra.mxu0 0
  %703 = vmatpush.bf16.msra.mxu0 0
  %704 = vmatpush.bf16.msra.mxu0 0
  %705 = vmatpush.bf16.msra.mxu0 0
  %706 = vmatpush.bf16.msra.mxu0 %v54
  %707 = vmatpush.bf16.msra.mxu0 %v53
  %708 = vmatmul.bf16.gmra.mxu0 %v698
  %v709 = vpop.f32.mrf.mxu0
  %v710 = vadd.f32 0.0, %v709
  %v711 = vpop.f32.mrf.mxu0
  %712 = vdwg.mxu0
  %v713 = vadd.f32 %v695, %v710
  %v714 = vxor.u32 %v713, 2147483648
  %v715 = vmul.f32 %v714, 1.442695
  %v716 = vpow.pop %v715
  %v717 = vadd.f32 %v716, 1.0
  %v718 = vrcp.pop %v717
  %v719 = vmul.f32 %v717, %v718
  %v720 = vsub.f32 1.0, %v719
  %v721 = vmul.f32 %v718, %v720
  %v722 = vadd.f32 %v718, %v721
  %vm723 = vweird.f32 %v717
  %vm724 = vweird.f32 %v718
  %vm725 = vmor %vm723, %vm724
  %v726 = vsel %vm725, %v718, %v722
  %v727 = vand.u32 2147483647, %v717
  %vm728 = vcmp.eq.f32.partialorder %v727, 8.507059e+37
  %v729 = vand.u32 %v717, 2147483648
  %v730 = vor.u32 1.1754944e-38, %v729
  %v731 = vsel %vm728, %v730, %v726
  %v732 = vmul.f32 1.0, %v731
  %v733 = vtanh.pop %v713
  %735 = vrot.lane.b32.xlu0 %v692, 32
  %v736 = vpop.permute.xlu0 %735
  %v738 = vmul.f32 %v732, %v736
  %740 = vrot.lane.b32.xlu0 %v733, 64
  %v741 = vpop.permute.xlu0 %740
  %v743 = vmul.f32 %v732, %v741
  %745 = vrot.lane.b32.xlu0 %v743, 32
  %v746 = vpop.permute.xlu0 %745
  %v748 = vadd.f32 %v738, %v746
  %v749 = vtanh.pop %v748
  %751 = vrot.lane.b32.xlu0 %v749, 64
  %v752 = vpop.permute.xlu0 %751
  %v754 = vmul.f32 %v732, %v752
  %v755 = vsel %vm40, 6, 1
  %vm756 = vcmp.lt.s32.totalorder %v755, %v24
  %758 = vrot.lane.b32.xlu0 %v754, 32
  %v759 = vpop.permute.xlu0 %758
  %v761 = vsel %vm756, %v759, 0.0
  %v763 = vrot.slane %v761, 1
  %v764 = vrot.slane %v761, 2
  %v765 = vrot.slane %v761, 3
  %v766 = vrot.slane %v761, 4
  %v767 = vrot.slane %v761, 5
  %v768 = vrot.slane %v761, 6
  %v769 = vrot.slane %v761, 7
  %777 = vst.msk [vmem:[%s3 + $0x6] sm:$0x1] %vm134, %v761
  %778 = vst.msk [vmem:[%s3 + $0xe] sm:$0x1] %vm134, %v763
  %779 = vst.msk [vmem:[%s3 + $0x16] sm:$0x1] %vm134, %v764
  %780 = vst.msk [vmem:[%s3 + $0x1e] sm:$0x1] %vm134, %v765
  %781 = vst.msk [vmem:[%s3 + $0x26] sm:$0x1] %vm134, %v766
  %782 = vst.msk [vmem:[%s3 + $0x2e] sm:$0x1] %vm134, %v767
  %783 = vst.msk [vmem:[%s3 + $0x36] sm:$0x1] %vm134, %v768
  %784 = vst.msk [vmem:[%s3 + $0x3e] sm:$0x1] %vm134, %v769
  %785 = vst.msk [vmem:[%s3 + $0x1] sm:$0x1] %vm143, %v761
  %786 = vst.msk [vmem:[%s3 + $0x9] sm:$0x1] %vm143, %v763
  %787 = vst.msk [vmem:[%s3 + $0x11] sm:$0x1] %vm143, %v764
  %788 = vst.msk [vmem:[%s3 + $0x19] sm:$0x1] %vm143, %v765
  %789 = vst.msk [vmem:[%s3 + $0x21] sm:$0x1] %vm143, %v766
  %790 = vst.msk [vmem:[%s3 + $0x29] sm:$0x1] %vm143, %v767
  %791 = vst.msk [vmem:[%s3 + $0x31] sm:$0x1] %vm143, %v768
  %792 = vst.msk [vmem:[%s3 + $0x39] sm:$0x1] %vm143, %v769
  %v793 = vsel %vm756, %v759, %v687
  %795 = vrot.lane.b32.xlu0 %v748, 96
  %v796 = vpop.permute.xlu0 %795
  %v798 = vsel %vm756, %v796, %v692
  %v799 = vld [vmem:[%s42] sm:$0xff]
  %v800 = vld [vmem:[%s0] sm:$0xff]
  %v801 = vsel %vm39, %v799, %v800
  %v802 = vpack.c.bf16 %v793, %v793
  %v804 = vsel %vm57, %v802, 0
  %806 = vmatpush.bf16.msra.mxu0 0
  %807 = vmatpush.bf16.msra.mxu0 0
  %808 = vmatpush.bf16.msra.mxu0 0
  %809 = vmatpush.bf16.msra.mxu0 0
  %810 = vmatpush.bf16.msra.mxu0 0
  %811 = vmatpush.bf16.msra.mxu0 0
  %812 = vmatpush.bf16.msra.mxu0 %v54
  %813 = vmatpush.bf16.msra.mxu0 %v53
  %814 = vmatmul.bf16.gmra.mxu0 %v804
  %v815 = vpop.f32.mrf.mxu0
  %v816 = vadd.f32 0.0, %v815
  %v817 = vpop.f32.mrf.mxu0
  %818 = vdwg.mxu0
  %v819 = vadd.f32 %v801, %v816
  %v820 = vxor.u32 %v819, 2147483648
  %v821 = vmul.f32 %v820, 1.442695
  %v822 = vpow.pop %v821
  %v823 = vadd.f32 %v822, 1.0
  %v824 = vrcp.pop %v823
  %v825 = vmul.f32 %v823, %v824
  %v826 = vsub.f32 1.0, %v825
  %v827 = vmul.f32 %v824, %v826
  %v828 = vadd.f32 %v824, %v827
  %vm829 = vweird.f32 %v823
  %vm830 = vweird.f32 %v824
  %vm831 = vmor %vm829, %vm830
  %v832 = vsel %vm831, %v824, %v828
  %v833 = vand.u32 2147483647, %v823
  %vm834 = vcmp.eq.f32.partialorder %v833, 8.507059e+37
  %v835 = vand.u32 %v823, 2147483648
  %v836 = vor.u32 1.1754944e-38, %v835
  %v837 = vsel %vm834, %v836, %v832
  %v838 = vmul.f32 1.0, %v837
  %v839 = vtanh.pop %v819
  %841 = vrot.lane.b32.xlu0 %v798, 32
  %v842 = vpop.permute.xlu0 %841
  %v844 = vmul.f32 %v838, %v842
  %846 = vrot.lane.b32.xlu0 %v839, 64
  %v847 = vpop.permute.xlu0 %846
  %v849 = vmul.f32 %v838, %v847
  %851 = vrot.lane.b32.xlu0 %v849, 32
  %v852 = vpop.permute.xlu0 %851
  %v854 = vadd.f32 %v844, %v852
  %v855 = vtanh.pop %v854
  %857 = vrot.lane.b32.xlu0 %v855, 64
  %v858 = vpop.permute.xlu0 %857
  %v860 = vmul.f32 %v838, %v858
  %v861 = vsel %vm40, 7, 0
  %vm862 = vcmp.lt.s32.totalorder %v861, %v24
  %864 = vrot.lane.b32.xlu0 %v860, 32
  %v865 = vpop.permute.xlu0 %864
  %v867 = vsel %vm862, %v865, 0.0
  %v869 = vrot.slane %v867, 1
  %v870 = vrot.slane %v867, 2
  %v871 = vrot.slane %v867, 3
  %v872 = vrot.slane %v867, 4
  %v873 = vrot.slane %v867, 5
  %v874 = vrot.slane %v867, 6
  %v875 = vrot.slane %v867, 7
  %883 = vst.msk [vmem:[%s3 + $0x7] sm:$0x1] %vm134, %v867
  %884 = vst.msk [vmem:[%s3 + $0xf] sm:$0x1] %vm134, %v869
  %885 = vst.msk [vmem:[%s3 + $0x17] sm:$0x1] %vm134, %v870
  %886 = vst.msk [vmem:[%s3 + $0x1f] sm:$0x1] %vm134, %v871
  %887 = vst.msk [vmem:[%s3 + $0x27] sm:$0x1] %vm134, %v872
  %888 = vst.msk [vmem:[%s3 + $0x2f] sm:$0x1] %vm134, %v873
  %889 = vst.msk [vmem:[%s3 + $0x37] sm:$0x1] %vm134, %v874
  %890 = vst.msk [vmem:[%s3 + $0x3f] sm:$0x1] %vm134, %v875
  %891 = vst.msk [vmem:[%s3] sm:$0x1] %vm143, %v867
  %892 = vst.msk [vmem:[%s3 + $0x8] sm:$0x1] %vm143, %v869
  %893 = vst.msk [vmem:[%s3 + $0x10] sm:$0x1] %vm143, %v870
  %894 = vst.msk [vmem:[%s3 + $0x18] sm:$0x1] %vm143, %v871
  %895 = vst.msk [vmem:[%s3 + $0x20] sm:$0x1] %vm143, %v872
  %896 = vst.msk [vmem:[%s3 + $0x28] sm:$0x1] %vm143, %v873
  %897 = vst.msk [vmem:[%s3 + $0x30] sm:$0x1] %vm143, %v874
  %898 = vst.msk [vmem:[%s3 + $0x38] sm:$0x1] %vm143, %v875
  %v899 = vsel %vm862, %v865, %v793
  %900 = vst.msk [vmem:[%s4] sm:$0xff] %vm57, %v899
  // Predicated region
  $region14: #{sketch_encoder_forward.1} parent=0 // pred_check
    _
  $region15: #{sketch_encoder_forward.1} parent=0 // pred_check_branch
    %902 = sbr.rel (0) target = $region17
  $region16: #{sketch_encoder_forward.1} parent=0 // pred_region
    _
  $region17: #{sketch_encoder_forward.1} parent=0 // pred_fallthru
    _
  // Predicated region
  $region18: #{sketch_encoder_forward.1} parent=0 // pred_check
    _
  $region19: #{sketch_encoder_forward.1} parent=0 // pred_check_branch
    %904 = sbr.rel (0) target = $region21
  $region20: #{sketch_encoder_forward.1} parent=0 // pred_region
    _
  $region21: #{sketch_encoder_forward.1} parent=0 // pred_fallthru
    _
  // Predicated region
  $region22: #{sketch_encoder_forward.1} parent=0 // pred_check
    _
  $region23: #{sketch_encoder_forward.1} parent=0 // pred_check_branch
    %906 = sbr.rel (0) target = $region25
  $region24: #{sketch_encoder_forward.1} parent=0 // pred_region
    _
  $region25: #{sketch_encoder_forward.1} parent=0 // pred_fallthru
    _
  // Predicated region
  $region26: #{sketch_encoder_forward.1} parent=0 // pred_check
    _
  $region27: #{sketch_encoder_forward.1} parent=0 // pred_check_branch
    %908 = sbr.rel (0) target = $region29
  $region28: #{sketch_encoder_forward.1} parent=0 // pred_region
    _
  $region29: #{sketch_encoder_forward.1} parent=0 // pred_fallthru
    _

</llo_original>
